<compile_context>
chip_gen: v6e
topology: v6e:2x2x1
jax: 0.10.0
libtpu: 0.0.40
codegen_flags: <defaults>
</compile_context>

<pallas_src>
import math
import jax
import jax.numpy as jnp
from jax.experimental import pallas as pl
from jax.experimental.pallas import tpu as pltpu


def _prelu(x, a):
    # PyTorch nn.PReLU with a single shared parameter (default init 0.25).
    return jnp.where(x >= 0, x, a * x)


def node_embed_kernel(nc_ref, des_ref, twt_ref,
                      w_nc_ref, w_des_ref, w_twt_ref, b_all_ref,
                      w_tot_ref, b_tot_ref,
                      alpha_ref, out_ref):
    a = alpha_ref[0, 0]  # shared PReLU slope (SMEM scalar)

    # Fused branch projection: one [tile, hidden]-wide f32 accumulation built
    # from three bf16 x bf16 -> f32 matmuls into disjoint column blocks.
    h = (jnp.dot(nc_ref[...], w_nc_ref[...],
                 preferred_element_type=jnp.float32)
         + jnp.dot(des_ref[...], w_des_ref[...],
                   preferred_element_type=jnp.float32)
         + jnp.dot(twt_ref[...], w_twt_ref[...],
                   preferred_element_type=jnp.float32)
         + b_all_ref[...])                                    # [tile, hidden]
    h = _prelu(h, a)

    # Final hidden x hidden layer (tiny, kept in f32 for fidelity).
    tot = jnp.dot(h, w_tot_ref[...],
                  preferred_element_type=jnp.float32) + b_tot_ref[...]
    out_ref[...] = _prelu(tot, a).astype(out_ref.dtype)


def node_feature_embedding(des_tensor, tweet_tensor, num_prop, category_prop,
                           params, dataset_name="TwiBot-20", tile_n=2048):
    """Pallas wrapper mirroring NodeFeatureEmbeddingLayer.forward."""
    if dataset_name == "Cresci-2015":
        # glue: torch expand(-1, 3) -> broadcast the single categorical column
        category_prop = jnp.broadcast_to(category_prop,
                                         (category_prop.shape[0], 3))

    n = des_tensor.shape[0]
    des_f = des_tensor.shape[1]
    twt_f = tweet_tensor.shape[1]
    nf = num_prop.shape[1]
    cf = category_prop.shape[1]
    hidden = params["w_tot"].shape[1]
    h4 = hidden // 4
    bf16 = jnp.bfloat16

    # --- Streamed operands (bf16 halves HBM bytes on the dominant inputs). ---
    des = des_tensor.astype(bf16)
    twt = tweet_tensor.astype(bf16)
    numcat = jnp.concatenate([num_prop, category_prop], axis=1).astype(bf16)

    # --- Fused, zero-padded [in_dim, hidden] weights + concatenated bias. ---
    w_nc = jnp.zeros((nf + cf, hidden), bf16)
    w_nc = w_nc.at[:nf, 0:h4].set(params["w_num"].astype(bf16))
    w_nc = w_nc.at[nf:, h4:2 * h4].set(params["w_cat"].astype(bf16))
    w_des = jnp.zeros((des_f, hidden), bf16)
    w_des = w_des.at[:, 2 * h4:3 * h4].set(params["w_des"].astype(bf16))
    w_twt = jnp.zeros((twt_f, hidden), bf16)
    w_twt = w_twt.at[:, 3 * h4:4 * h4].set(params["w_twt"].astype(bf16))
    b_all = jnp.concatenate([params["b_num"], params["b_cat"],
                             params["b_des"], params["b_twt"]],
                            axis=1).astype(jnp.float32)        # [1, hidden]

    w_tot = params["w_tot"].astype(jnp.float32)
    b_tot = params["b_tot"].astype(jnp.float32)
    alpha = params["alpha"].reshape(1, 1).astype(jnp.float32)  # SMEM scalar

    # Row tile: multiple of 16 (bf16 sublane packing) unless it covers N.
    tile = min(tile_n, n)
    if tile < n:
        tile = max(16, (tile // 16) * 16)
    grid = (pl.cdiv(n, tile),)

    flops = 2 * n * ((nf + cf) * hidden + des_f * hidden + twt_f * hidden
                     + hidden * hidden)
    bytes_accessed = (
        (numcat.size + des.size + twt.size) * 2        # bf16 streams
        + n * hidden * 4                               # f32 output
        + (w_nc.size + w_des.size + w_twt.size) * 2
        + (w_tot.size + b_all.size + b_tot.size) * 4)
    cost = pl.CostEstimate(flops=flops, transcendentals=0,
                           bytes_accessed=bytes_accessed)

    return pl.pallas_call(
        node_embed_kernel,
        out_shape=jax.ShapeDtypeStruct((n, hidden), jnp.float32),
        grid_spec=pltpu.PrefetchScalarGridSpec(
            num_scalar_prefetch=0,
            grid=grid,
            in_specs=[
                pl.BlockSpec((tile, nf + cf), lambda i: (i, 0)),   # num|cat
                pl.BlockSpec((tile, des_f), lambda i: (i, 0)),     # des
                pl.BlockSpec((tile, twt_f), lambda i: (i, 0)),     # tweet
                pl.BlockSpec((nf + cf, hidden), lambda i: (0, 0)), # w_nc (fused)
                pl.BlockSpec((des_f, hidden), lambda i: (0, 0)),   # w_des (fused)
                pl.BlockSpec((twt_f, hidden), lambda i: (0, 0)),   # w_twt (fused)
                pl.BlockSpec((1, hidden), lambda i: (0, 0)),       # b_all
                pl.BlockSpec((hidden, hidden), lambda i: (0, 0)),  # w_tot
                pl.BlockSpec((1, hidden), lambda i: (0, 0)),       # b_tot
                pl.BlockSpec(memory_space=pltpu.MemorySpace.SMEM), # alpha
            ],
            out_specs=pl.BlockSpec((tile, hidden), lambda i: (i, 0)),
        ),
        compiler_params=pltpu.CompilerParams(
            dimension_semantics=("parallel",),
            vmem_limit_bytes=48 * 1024 * 1024),
        cost_estimate=cost,
    )(numcat, des, twt,
      w_nc, w_des, w_twt, b_all,
      w_tot, b_tot, alpha)


def init_params(key, hidden_dim=32, numerical_feature_size=5,
                categorical_feature_size=3, des_feature_size=768,
                tweet_feature_size=768):
    """Deterministic init matching nn.init.kaiming_normal_ (fan_in, a=0),
    zero bias, PReLU alpha = 0.25.  Weights stored as [in, out]."""
    h4 = hidden_dim // 4
    keys = jax.random.split(key, 5)

    def kaiming(k, fan_in, fan_out):
        std = math.sqrt(2.0 / fan_in)
        return jax.random.normal(k, (fan_in, fan_out), jnp.float32) * std

    return {
        "w_num": kaiming(keys[0], numerical_feature_size, h4),
        "b_num": jnp.zeros((1, h4), jnp.float32),
        "w_cat": kaiming(keys[1], categorical_feature_size, h4),
        "b_cat": jnp.zeros((1, h4), jnp.float32),
        "w_des": kaiming(keys[2], des_feature_size, h4),
        "b_des": jnp.zeros((1, h4), jnp.float32),
        "w_twt": kaiming(keys[3], tweet_feature_size, h4),
        "b_twt": jnp.zeros((1, h4), jnp.float32),
        "w_tot": kaiming(keys[4], hidden_dim, hidden_dim),
        "b_tot": jnp.zeros((1, hidden_dim), jnp.float32),
        "alpha": jnp.full((1,), 0.25, jnp.float32),
    }


def reference(des, twt, num, cat, p):
    """Pure-JAX reference (f32 math, upcasting any bf16 storage)."""
    f32 = jnp.float32
    a = p["alpha"].astype(f32)[0]

    def prelu(x):
        return jnp.where(x >= 0, x, a * x)

    num_h = prelu(num.astype(f32) @ p["w_num"].astype(f32) + p["b_num"].astype(f32))
    cat_h = prelu(cat.astype(f32) @ p["w_cat"].astype(f32) + p["b_cat"].astype(f32))
    des_h = prelu(des.astype(f32) @ p["w_des"].astype(f32) + p["b_des"].astype(f32))
    twt_h = prelu(twt.astype(f32) @ p["w_twt"].astype(f32) + p["b_twt"].astype(f32))
    x = jnp.concatenate([num_h, cat_h, des_h, twt_h], axis=1)
    return prelu(x @ p["w_tot"].astype(f32) + p["b_tot"].astype(f32))


if __name__ == "__main__":
    N = 200                       # small demo; exercises a partial last block
    HIDDEN = 32
    NUM_F, CAT_F, DES_F, TWT_F = 5, 3, 768, 768
    TILE_N = 128                  # small demo tile; default is 2048 for real N

    root = jax.random.PRNGKey(0)
    kp, kd, kt, kn, kc = jax.random.split(root, 5)

    params = init_params(kp, hidden_dim=HIDDEN,
                         numerical_feature_size=NUM_F,
                         categorical_feature_size=CAT_F,
                         des_feature_size=DES_F,
                         tweet_feature_size=TWT_F)

    des_f32 = jax.random.normal(kd, (N, DES_F), jnp.float32)
    tweet_f32 = jax.random.normal(kt, (N, TWT_F), jnp.float32)
    num_prop = jax.random.normal(kn, (N, NUM_F), jnp.float32)
    category_prop = jax.random.normal(kc, (N, CAT_F), jnp.float32)

    # The kernel streams des/tweet (and numcat) as bf16; pass them pre-cast so
    # the HBM savings are real (no extra XLA cast pass over the big tensors).
    des_bf = des_f32.astype(jnp.bfloat16)
    tweet_bf = tweet_f32.astype(jnp.bfloat16)

    fwd = jax.jit(node_feature_embedding,
                  static_argnames=("dataset_name", "tile_n"))
    out = fwd(des_bf, tweet_bf, num_prop, category_prop, params,
              tile_n=TILE_N)
    out = jax.block_until_ready(out)

    assert out.shape == (N, HIDDEN)
    assert bool(jnp.all(jnp.isfinite(out)))

    # Check 1: kernel vs a bf16-storage-consistent f32 reference (kernel math).
    params_bf = dict(params)
    for k in ("w_num", "w_cat", "w_des", "w_twt"):
        params_bf[k] = params[k].astype(jnp.bfloat16)
    ref_bf = reference(des_bf, tweet_bf,
                       num_prop.astype(jnp.bfloat16),
                       category_prop.astype(jnp.bfloat16), params_bf)
    assert jnp.allclose(out, ref_bf, atol=3e-2, rtol=3e-2)

    # Check 2: fidelity vs the pure-f32 PyTorch-equivalent reference (loose
    # tolerance only because inputs + branch weights are stored in bf16).
    ref_f32 = reference(des_f32, tweet_f32, num_prop, category_prop, params)
    assert jnp.allclose(out, ref_f32, atol=1.5e-1, rtol=1.5e-1)

    print("KERNEL_OK")
</pallas_src>

<mosaic_0001>
module attributes {stable_mosaic.version = 11 : i64} {
  func.func @node_embed_kernel(%arg0: i32, %arg1: memref<128x8xbf16, #tpu.memory_space<vmem>>, %arg2: memref<128x768xbf16, #tpu.memory_space<vmem>>, %arg3: memref<128x768xbf16, #tpu.memory_space<vmem>>, %arg4: memref<8x32xbf16, #tpu.memory_space<vmem>>, %arg5: memref<768x32xbf16, #tpu.memory_space<vmem>>, %arg6: memref<768x32xbf16, #tpu.memory_space<vmem>>, %arg7: memref<1x32xf32, #tpu.memory_space<vmem>>, %arg8: memref<32x32xf32, #tpu.memory_space<vmem>>, %arg9: memref<1x32xf32, #tpu.memory_space<vmem>>, %arg10: memref<1x1xf32, #tpu.memory_space<smem>>, %arg11: memref<128x32xf32, #tpu.memory_space<vmem>>) attributes {dimension_semantics = [#tpu.dimension_semantics<parallel>], iteration_bounds = array<i64: 2>, scalar_prefetch = 0 : i64, scratch_operands = 0 : i64, tpu.core_type = #tpu.core_type<tc>, window_params = [{transform_indices = @transform_0, window_bounds = array<i64: 128, 8>}, {transform_indices = @transform_1, window_bounds = array<i64: 128, 768>}, {transform_indices = @transform_2, window_bounds = array<i64: 128, 768>}, {pipeline_mode = #tpu.pipeline_mode<synchronous>, transform_indices = @transform_3, window_bounds = array<i64: 8, 32>}, {pipeline_mode = #tpu.pipeline_mode<synchronous>, transform_indices = @transform_4, window_bounds = array<i64: 768, 32>}, {pipeline_mode = #tpu.pipeline_mode<synchronous>, transform_indices = @transform_5, window_bounds = array<i64: 768, 32>}, {pipeline_mode = #tpu.pipeline_mode<synchronous>, transform_indices = @transform_6, window_bounds = array<i64: 1, 32>}, {pipeline_mode = #tpu.pipeline_mode<synchronous>, transform_indices = @transform_7, window_bounds = array<i64: 32, 32>}, {pipeline_mode = #tpu.pipeline_mode<synchronous>, transform_indices = @transform_8, window_bounds = array<i64: 1, 32>}, {transform_indices = @transform_9, window_bounds = array<i64: 1, 1>}, {transform_indices = @transform_10, window_bounds = array<i64: 128, 32>}]} {
    %c0 = arith.constant 0 : index
    %c0_0 = arith.constant 0 : index
    %0 = memref.load %arg10[%c0, %c0_0] : memref<1x1xf32, #tpu.memory_space<smem>>
    %c0_1 = arith.constant 0 : index
    %c0_2 = arith.constant 0 : index
    %1 = vector.load %arg1[%c0_1, %c0_2] : memref<128x8xbf16, #tpu.memory_space<vmem>>, vector<128x8xbf16>
    %c0_3 = arith.constant 0 : index
    %c0_4 = arith.constant 0 : index
    %2 = vector.load %arg4[%c0_3, %c0_4] : memref<8x32xbf16, #tpu.memory_space<vmem>>, vector<8x32xbf16>
    %cst = arith.constant dense<0.000000e+00> : vector<128x32xf32>
    %3 = tpu.matmul %1, %2, %cst {dimension_numbers = #tpu.dot_dimension_numbers<[1], [0], [0], [1], [0, 0, 1, 1], [], []>} : vector<128x8xbf16>, vector<8x32xbf16>, vector<128x32xf32> -> vector<128x32xf32>
    %c0_5 = arith.constant 0 : index
    %c0_6 = arith.constant 0 : index
    %4 = vector.load %arg2[%c0_5, %c0_6] : memref<128x768xbf16, #tpu.memory_space<vmem>>, vector<128x768xbf16>
    %c0_7 = arith.constant 0 : index
    %c0_8 = arith.constant 0 : index
    %5 = vector.load %arg5[%c0_7, %c0_8] : memref<768x32xbf16, #tpu.memory_space<vmem>>, vector<768x32xbf16>
    %cst_9 = arith.constant dense<0.000000e+00> : vector<128x32xf32>
    %6 = tpu.matmul %4, %5, %cst_9 {dimension_numbers = #tpu.dot_dimension_numbers<[1], [0], [0], [1], [0, 0, 1, 1], [], []>} : vector<128x768xbf16>, vector<768x32xbf16>, vector<128x32xf32> -> vector<128x32xf32>
    %7 = arith.addf %3, %6 : vector<128x32xf32>
    %c0_10 = arith.constant 0 : index
    %c0_11 = arith.constant 0 : index
    %8 = vector.load %arg3[%c0_10, %c0_11] : memref<128x768xbf16, #tpu.memory_space<vmem>>, vector<128x768xbf16>
    %c0_12 = arith.constant 0 : index
    %c0_13 = arith.constant 0 : index
    %9 = vector.load %arg6[%c0_12, %c0_13] : memref<768x32xbf16, #tpu.memory_space<vmem>>, vector<768x32xbf16>
    %cst_14 = arith.constant dense<0.000000e+00> : vector<128x32xf32>
    %10 = tpu.matmul %8, %9, %cst_14 {dimension_numbers = #tpu.dot_dimension_numbers<[1], [0], [0], [1], [0, 0, 1, 1], [], []>} : vector<128x768xbf16>, vector<768x32xbf16>, vector<128x32xf32> -> vector<128x32xf32>
    %11 = arith.addf %7, %10 : vector<128x32xf32>
    %c0_15 = arith.constant 0 : index
    %c0_16 = arith.constant 0 : index
    %12 = vector.load %arg7[%c0_15, %c0_16] : memref<1x32xf32, #tpu.memory_space<vmem>>, vector<1x32xf32>
    %13 = vector.broadcast %12 : vector<1x32xf32> to vector<128x32xf32>
    %14 = arith.addf %11, %13 : vector<128x32xf32>
    %cst_17 = arith.constant 0.000000e+00 : f32
    %15 = vector.broadcast %cst_17 : f32 to vector<128x32xf32>
    %16 = arith.cmpf oge, %14, %15 : vector<128x32xf32>
    %17 = vector.broadcast %0 : f32 to vector<128x32xf32>
    %18 = arith.mulf %17, %14 : vector<128x32xf32>
    %19 = arith.select %16, %14, %18 : vector<128x32xi1>, vector<128x32xf32>
    %c0_18 = arith.constant 0 : index
    %c0_19 = arith.constant 0 : index
    %20 = vector.load %arg8[%c0_18, %c0_19] : memref<32x32xf32, #tpu.memory_space<vmem>>, vector<32x32xf32>
    %cst_20 = arith.constant dense<0.000000e+00> : vector<128x32xf32>
    %21 = tpu.matmul %19, %20, %cst_20 {dimension_numbers = #tpu.dot_dimension_numbers<[1], [0], [0], [1], [0, 0, 1, 1], [], []>} : vector<128x32xf32>, vector<32x32xf32>, vector<128x32xf32> -> vector<128x32xf32>
    %c0_21 = arith.constant 0 : index
    %c0_22 = arith.constant 0 : index
    %22 = vector.load %arg9[%c0_21, %c0_22] : memref<1x32xf32, #tpu.memory_space<vmem>>, vector<1x32xf32>
    %23 = vector.broadcast %22 : vector<1x32xf32> to vector<128x32xf32>
    %24 = arith.addf %21, %23 : vector<128x32xf32>
    %cst_23 = arith.constant 0.000000e+00 : f32
    %25 = vector.broadcast %cst_23 : f32 to vector<128x32xf32>
    %26 = arith.cmpf oge, %24, %25 : vector<128x32xf32>
    %27 = vector.broadcast %0 : f32 to vector<128x32xf32>
    %28 = arith.mulf %27, %24 : vector<128x32xf32>
    %29 = arith.select %26, %24, %28 : vector<128x32xi1>, vector<128x32xf32>
    %c0_24 = arith.constant 0 : index
    %c0_25 = arith.constant 0 : index
    %30 = vector.load %arg11[%c0_24, %c0_25] : memref<128x32xf32, #tpu.memory_space<vmem>>, vector<128x32xf32>
    tpu.vector_store %arg11[%c0_24, %c0_25], %29 {strides = array<i32>} : memref<128x32xf32, #tpu.memory_space<vmem>>, vector<128x32xf32>,
    return
  }
  func.func @transform_0(%arg0: i32) -> (i32, i32) {
    %c0_i32 = arith.constant 0 : i32
    %c0_i32_0 = arith.constant 0 : i32
    return %arg0, %c0_i32 : i32, i32
  }
  func.func @transform_1(%arg0: i32) -> (i32, i32) {
    %c0_i32 = arith.constant 0 : i32
    %c0_i32_0 = arith.constant 0 : i32
    return %arg0, %c0_i32 : i32, i32
  }
  func.func @transform_2(%arg0: i32) -> (i32, i32) {
    %c0_i32 = arith.constant 0 : i32
    %c0_i32_0 = arith.constant 0 : i32
    return %arg0, %c0_i32 : i32, i32
  }
  func.func @transform_3(%arg0: i32) -> (i32, i32) {
    %c0_i32 = arith.constant 0 : i32
    %c0_i32_0 = arith.constant 0 : i32
    %c0_i32_1 = arith.constant 0 : i32
    return %c0_i32, %c0_i32_0 : i32, i32
  }
  func.func @transform_4(%arg0: i32) -> (i32, i32) {
    %c0_i32 = arith.constant 0 : i32
    %c0_i32_0 = arith.constant 0 : i32
    %c0_i32_1 = arith.constant 0 : i32
    return %c0_i32, %c0_i32_0 : i32, i32
  }
  func.func @transform_5(%arg0: i32) -> (i32, i32) {
    %c0_i32 = arith.constant 0 : i32
    %c0_i32_0 = arith.constant 0 : i32
    %c0_i32_1 = arith.constant 0 : i32
    return %c0_i32, %c0_i32_0 : i32, i32
  }
  func.func @transform_6(%arg0: i32) -> (i32, i32) {
    %c0_i32 = arith.constant 0 : i32
    %c0_i32_0 = arith.constant 0 : i32
    %c0_i32_1 = arith.constant 0 : i32
    return %c0_i32, %c0_i32_0 : i32, i32
  }
  func.func @transform_7(%arg0: i32) -> (i32, i32) {
    %c0_i32 = arith.constant 0 : i32
    %c0_i32_0 = arith.constant 0 : i32
    %c0_i32_1 = arith.constant 0 : i32
    return %c0_i32, %c0_i32_0 : i32, i32
  }
  func.func @transform_8(%arg0: i32) -> (i32, i32) {
    %c0_i32 = arith.constant 0 : i32
    %c0_i32_0 = arith.constant 0 : i32
    %c0_i32_1 = arith.constant 0 : i32
    return %c0_i32, %c0_i32_0 : i32, i32
  }
  func.func @transform_9(%arg0: i32) -> (i32, i32) {
    %c0_i32 = arith.constant 0 : i32
    %c0_i32_0 = arith.constant 0 : i32
    %c0_i32_1 = arith.constant 0 : i32
    return %c0_i32, %c0_i32_0 : i32, i32
  }
  func.func @transform_10(%arg0: i32) -> (i32, i32) {
    %c0_i32 = arith.constant 0 : i32
    %c0_i32_0 = arith.constant 0 : i32
    return %arg0, %c0_i32 : i32, i32
  }
}

</mosaic_0001>

<llo_original>
// kernel: node_feature_embedding.1
$region0: #{node_feature_embedding.1}
  #allocation0 [shape = 'u32[]', space=smem, size = 0x4, offset = 0x4, fixed_abs, tag = 'smem constant byte address 0x4 - core index']
  #allocation1 [shape = 'u32[144,128]{1,0:T(1,128)}', space=vmem, size = 0x12000, scoped, tag = 'internal scratch']
  #allocation2 [shape = 'f32[1,1]{1,0:T(1,128)S(6)}', space=smem, size = 0x200, scoped, tag = 'scoped memory for node_feature_embedding.1']
  %s0 = inlined_call_operand.vmem [shape: bf16[200,8], index: 0, kind: input, shape index: {}]
  %s1 = inlined_call_operand.vmem [shape: bf16[200,768], index: 1, kind: input, shape index: {}]
  %s2 = inlined_call_operand.vmem [shape: bf16[200,768], index: 2, kind: input, shape index: {}]
  %s3 = inlined_call_operand.vmem [shape: bf16[8,32], index: 3, kind: input, shape index: {}]
  %s4 = inlined_call_operand.vmem [shape: bf16[768,32], index: 4, kind: input, shape index: {}]
  %s5 = inlined_call_operand.vmem [shape: bf16[768,32], index: 5, kind: input, shape index: {}]
  %s6 = inlined_call_operand.vmem [shape: f32[1,32], index: 6, kind: input, shape index: {}]
  %s7 = inlined_call_operand.vmem [shape: f32[32,32], index: 7, kind: input, shape index: {}]
  %s8 = inlined_call_operand.vmem [shape: f32[1,32], index: 8, kind: input, shape index: {}]
  %s9 = inlined_call_operand.<no memory space> [shape: f32[1,1], index: 9, kind: input, shape index: {}]
  %s10 = inlined_call_operand.vmem [shape: f32[200,32], index: 10, kind: output, shape index: {}]
  %s11 = sld [smem:[#allocation0]]
  $region121: #{node_feature_embedding.1} parent=0
    _
  %s13 = ssub.s32 1, %s11
  %s14 = scalar_select 0, %s13, %s11
  %15 = sst [smem:[#allocation2]] %s9
  $region1: #{node_feature_embedding.1} parent=0
    #allocation3 [shape = 'u8[131072]{0}', space=vmem, size = 0x20000, scoped, tag = 'output window, operand 0']
    loop: start=0, step=1, limit=4
    $region2: #{node_feature_embedding.1} parent=1 // loop_pre_header
      _
    $region3: #{node_feature_embedding.1} parent=1 // loop_header
      %s17 = sphi 0, %s21
      %p18 = scmp.ge.s32.totalorder %s17, 4
      %s27 = sphi 0, %s29
      %s30 = sphi 0, %s27
      %s31 = sphi 0, %s30
      %s47 = sphi 0, %s31
      %s53 = sphi 0, %s55
      %s56 = sphi 0, %s53
      %s57 = sphi 0, %s56
      %s73 = sphi 0, %s57
      %s79 = sphi 0, %s81
      %s82 = sphi 0, %s79
      %s83 = sphi 0, %s82
      %s99 = sphi 0, %s83
      %s103 = sphi 0, %s103
      %s105 = sphi 0, %s103
      %s106 = sphi 0, %s105
      %s120 = sphi 0, %s106
      %s124 = sphi 0, %s124
      %s126 = sphi 0, %s124
      %s127 = sphi 0, %s126
      %s141 = sphi 0, %s127
      %s145 = sphi 0, %s145
      %s147 = sphi 0, %s145
      %s148 = sphi 0, %s147
      %s162 = sphi 0, %s148
      %s166 = sphi 0, %s166
      %s168 = sphi 0, %s166
      %s169 = sphi 0, %s168
      %s183 = sphi 0, %s169
      %s187 = sphi 0, %s187
      %s189 = sphi 0, %s187
      %s190 = sphi 0, %s189
      %s204 = sphi 0, %s190
      %s208 = sphi 0, %s208
      %s210 = sphi 0, %s208
      %s211 = sphi 0, %s210
      %s225 = sphi 0, %s211
      %s229 = sphi 0, %s229
      %s231 = sphi 0, %s229
      %s232 = sphi 0, %s231
      %s246 = sphi 0, %s232
      %s252 = sphi 0, %s254
      %s255 = sphi 0, %s252
      %s256 = sphi 0, %s255
      %s272 = sphi 0, %s256
    $region4: #{node_feature_embedding.1} parent=1 // loop_header_branch
      %20 = sbr.rel (%p18) target = $region8
    $region5: #{node_feature_embedding.1} parent=1 // loop_body
      %s22 = ssub.s32 %s17, 1
      %s23 = ssub.s32 %s17, 2
      %s24 = sadd.s32 %s17, 1
      %s25 = ssub.s32 %s17, %s24
      %p26 = scmp.eq.s32.totalorder %s25, 0
      %s28 = sadd.s32 %s27, 1
      %s29 = scalar_select %p26, %s27, %s28
      %p32 = pneg %p26
      %p33 = scmp.eq.s32.totalorder %s17, 1
      %p34 = por %p32, %p33
      %p35 = scmp.ne.s32.totalorder %s27, %s30
      %p36 = scmp.eq.s32.totalorder %s17, 0
      %p37 = por %p35, %p36
      %p38 = scmp.ne.s32.totalorder %s27, %s30
      %p39 = scmp.eq.s32.totalorder %s22, 1
      %p40 = por %p38, %p39
      %p41 = scmp.ne.s32.totalorder %s30, %s31
      %p42 = scmp.eq.s32.totalorder %s22, 0
      %p43 = por %p41, %p42
      %p44 = scmp.ne.s32.totalorder %s30, %s31
      %p45 = scmp.eq.s32.totalorder %s23, 1
      %p46 = por %p44, %p45
      %p48 = scmp.ne.s32.totalorder %s31, %s47
      %p49 = scmp.eq.s32.totalorder %s23, 0
      %p50 = por %p48, %p49
      %s51 = ssub.s32 %s17, %s24
      %p52 = scmp.eq.s32.totalorder %s51, 0
      %s54 = sadd.s32 %s53, 1
      %s55 = scalar_select %p52, %s53, %s54
      %p58 = pneg %p52
      %p59 = scmp.eq.s32.totalorder %s17, 1
      %p60 = por %p58, %p59
      %p61 = scmp.ne.s32.totalorder %s53, %s56
      %p62 = scmp.eq.s32.totalorder %s17, 0
      %p63 = por %p61, %p62
      %p64 = scmp.ne.s32.totalorder %s53, %s56
      %p65 = scmp.eq.s32.totalorder %s22, 1
      %p66 = por %p64, %p65
      %p67 = scmp.ne.s32.totalorder %s56, %s57
      %p68 = scmp.eq.s32.totalorder %s22, 0
      %p69 = por %p67, %p68
      %p70 = scmp.ne.s32.totalorder %s56, %s57
      %p71 = scmp.eq.s32.totalorder %s23, 1
      %p72 = por %p70, %p71
      %p74 = scmp.ne.s32.totalorder %s57, %s73
      %p75 = scmp.eq.s32.totalorder %s23, 0
      %p76 = por %p74, %p75
      %s77 = ssub.s32 %s17, %s24
      %p78 = scmp.eq.s32.totalorder %s77, 0
      %s80 = sadd.s32 %s79, 1
      %s81 = scalar_select %p78, %s79, %s80
      %p84 = pneg %p78
      %p85 = scmp.eq.s32.totalorder %s17, 1
      %p86 = por %p84, %p85
      %p87 = scmp.ne.s32.totalorder %s79, %s82
      %p88 = scmp.eq.s32.totalorder %s17, 0
      %p89 = por %p87, %p88
      %p90 = scmp.ne.s32.totalorder %s79, %s82
      %p91 = scmp.eq.s32.totalorder %s22, 1
      %p92 = por %p90, %p91
      %p93 = scmp.ne.s32.totalorder %s82, %s83
      %p94 = scmp.eq.s32.totalorder %s22, 0
      %p95 = por %p93, %p94
      %p96 = scmp.ne.s32.totalorder %s82, %s83
      %p97 = scmp.eq.s32.totalorder %s23, 1
      %p98 = por %p96, %p97
      %p100 = scmp.ne.s32.totalorder %s83, %s99
      %p101 = scmp.eq.s32.totalorder %s23, 0
      %p102 = por %p100, %p101
      %s104 = sadd.s32 %s103, 1
      %p107 = scmp.eq.s32.totalorder %s17, 1
      %p108 = scmp.ne.s32.totalorder %s103, %s105
      %p109 = scmp.eq.s32.totalorder %s17, 0
      %p110 = por %p108, %p109
      %p111 = scmp.ne.s32.totalorder %s103, %s105
      %p112 = scmp.eq.s32.totalorder %s22, 1
      %p113 = por %p111, %p112
      %p114 = scmp.ne.s32.totalorder %s105, %s106
      %p115 = scmp.eq.s32.totalorder %s22, 0
      %p116 = por %p114, %p115
      %p117 = scmp.ne.s32.totalorder %s105, %s106
      %p118 = scmp.eq.s32.totalorder %s23, 1
      %p119 = por %p117, %p118
      %p121 = scmp.ne.s32.totalorder %s106, %s120
      %p122 = scmp.eq.s32.totalorder %s23, 0
      %p123 = por %p121, %p122
      %s125 = sadd.s32 %s124, 1
      %p128 = scmp.eq.s32.totalorder %s17, 1
      %p129 = scmp.ne.s32.totalorder %s124, %s126
      %p130 = scmp.eq.s32.totalorder %s17, 0
      %p131 = por %p129, %p130
      %p132 = scmp.ne.s32.totalorder %s124, %s126
      %p133 = scmp.eq.s32.totalorder %s22, 1
      %p134 = por %p132, %p133
      %p135 = scmp.ne.s32.totalorder %s126, %s127
      %p136 = scmp.eq.s32.totalorder %s22, 0
      %p137 = por %p135, %p136
      %p138 = scmp.ne.s32.totalorder %s126, %s127
      %p139 = scmp.eq.s32.totalorder %s23, 1
      %p140 = por %p138, %p139
      %p142 = scmp.ne.s32.totalorder %s127, %s141
      %p143 = scmp.eq.s32.totalorder %s23, 0
      %p144 = por %p142, %p143
      %s146 = sadd.s32 %s145, 1
      %p149 = scmp.eq.s32.totalorder %s17, 1
      %p150 = scmp.ne.s32.totalorder %s145, %s147
      %p151 = scmp.eq.s32.totalorder %s17, 0
      %p152 = por %p150, %p151
      %p153 = scmp.ne.s32.totalorder %s145, %s147
      %p154 = scmp.eq.s32.totalorder %s22, 1
      %p155 = por %p153, %p154
      %p156 = scmp.ne.s32.totalorder %s147, %s148
      %p157 = scmp.eq.s32.totalorder %s22, 0
      %p158 = por %p156, %p157
      %p159 = scmp.ne.s32.totalorder %s147, %s148
      %p160 = scmp.eq.s32.totalorder %s23, 1
      %p161 = por %p159, %p160
      %p163 = scmp.ne.s32.totalorder %s148, %s162
      %p164 = scmp.eq.s32.totalorder %s23, 0
      %p165 = por %p163, %p164
      %s167 = sadd.s32 %s166, 1
      %p170 = scmp.eq.s32.totalorder %s17, 1
      %p171 = scmp.ne.s32.totalorder %s166, %s168
      %p172 = scmp.eq.s32.totalorder %s17, 0
      %p173 = por %p171, %p172
      %p174 = scmp.ne.s32.totalorder %s166, %s168
      %p175 = scmp.eq.s32.totalorder %s22, 1
      %p176 = por %p174, %p175
      %p177 = scmp.ne.s32.totalorder %s168, %s169
      %p178 = scmp.eq.s32.totalorder %s22, 0
      %p179 = por %p177, %p178
      %p180 = scmp.ne.s32.totalorder %s168, %s169
      %p181 = scmp.eq.s32.totalorder %s23, 1
      %p182 = por %p180, %p181
      %p184 = scmp.ne.s32.totalorder %s169, %s183
      %p185 = scmp.eq.s32.totalorder %s23, 0
      %p186 = por %p184, %p185
      %s188 = sadd.s32 %s187, 1
      %p191 = scmp.eq.s32.totalorder %s17, 1
      %p192 = scmp.ne.s32.totalorder %s187, %s189
      %p193 = scmp.eq.s32.totalorder %s17, 0
      %p194 = por %p192, %p193
      %p195 = scmp.ne.s32.totalorder %s187, %s189
      %p196 = scmp.eq.s32.totalorder %s22, 1
      %p197 = por %p195, %p196
      %p198 = scmp.ne.s32.totalorder %s189, %s190
      %p199 = scmp.eq.s32.totalorder %s22, 0
      %p200 = por %p198, %p199
      %p201 = scmp.ne.s32.totalorder %s189, %s190
      %p202 = scmp.eq.s32.totalorder %s23, 1
      %p203 = por %p201, %p202
      %p205 = scmp.ne.s32.totalorder %s190, %s204
      %p206 = scmp.eq.s32.totalorder %s23, 0
      %p207 = por %p205, %p206
      %s209 = sadd.s32 %s208, 1
      %p212 = scmp.eq.s32.totalorder %s17, 1
      %p213 = scmp.ne.s32.totalorder %s208, %s210
      %p214 = scmp.eq.s32.totalorder %s17, 0
      %p215 = por %p213, %p214
      %p216 = scmp.ne.s32.totalorder %s208, %s210
      %p217 = scmp.eq.s32.totalorder %s22, 1
      %p218 = por %p216, %p217
      %p219 = scmp.ne.s32.totalorder %s210, %s211
      %p220 = scmp.eq.s32.totalorder %s22, 0
      %p221 = por %p219, %p220
      %p222 = scmp.ne.s32.totalorder %s210, %s211
      %p223 = scmp.eq.s32.totalorder %s23, 1
      %p224 = por %p222, %p223
      %p226 = scmp.ne.s32.totalorder %s211, %s225
      %p227 = scmp.eq.s32.totalorder %s23, 0
      %p228 = por %p226, %p227
      %s230 = sadd.s32 %s229, 1
      %p233 = scmp.eq.s32.totalorder %s17, 1
      %p234 = scmp.ne.s32.totalorder %s229, %s231
      %p235 = scmp.eq.s32.totalorder %s17, 0
      %p236 = por %p234, %p235
      %p237 = scmp.ne.s32.totalorder %s229, %s231
      %p238 = scmp.eq.s32.totalorder %s22, 1
      %p239 = por %p237, %p238
      %p240 = scmp.ne.s32.totalorder %s231, %s232
      %p241 = scmp.eq.s32.totalorder %s22, 0
      %p242 = por %p240, %p241
      %p243 = scmp.ne.s32.totalorder %s231, %s232
      %p244 = scmp.eq.s32.totalorder %s23, 1
      %p245 = por %p243, %p244
      %p247 = scmp.ne.s32.totalorder %s232, %s246
      %p248 = scmp.eq.s32.totalorder %s23, 0
      %p249 = por %p247, %p248
      %s250 = ssub.s32 %s17, %s24
      %p251 = scmp.eq.s32.totalorder %s250, 0
      %s253 = sadd.s32 %s252, 1
      %s254 = scalar_select %p251, %s252, %s253
      %p257 = pneg %p251
      %p258 = scmp.eq.s32.totalorder %s17, 1
      %p259 = por %p257, %p258
      %p260 = scmp.ne.s32.totalorder %s252, %s255
      %p261 = scmp.eq.s32.totalorder %s17, 0
      %p262 = por %p260, %p261
      %p263 = scmp.ne.s32.totalorder %s252, %s255
      %p264 = scmp.eq.s32.totalorder %s22, 1
      %p265 = por %p263, %p264
      %p266 = scmp.ne.s32.totalorder %s255, %s256
      %p267 = scmp.eq.s32.totalorder %s22, 0
      %p268 = por %p266, %p267
      %p269 = scmp.ne.s32.totalorder %s255, %s256
      %p270 = scmp.eq.s32.totalorder %s23, 1
      %p271 = por %p269, %p270
      %p273 = scmp.ne.s32.totalorder %s256, %s272
      %p274 = scmp.eq.s32.totalorder %s23, 0
      %p275 = por %p273, %p274
      %p276 = scmp.le.s32.totalorder 1, %s17
      %p277 = scmp.lt.s32.totalorder %s17, 3
      %p278 = pnand %p276, %p277
      %p279 = pneg %p278
      // Predicated region
      $region9: #{node_feature_embedding.1} parent=5 // pred_check
        _
      $region10: #{node_feature_embedding.1} parent=5 // pred_check_branch
        %281 = sbr.rel (%p278) target = $region12
      $region11: #{node_feature_embedding.1} parent=5 // pred_region
        %s282 = ssub.s32 %s17, 1
        // Predicated region
        $region13: #{node_feature_embedding.1} parent=11 // pred_check
          %p283 = pneg %p116
        $region14: #{node_feature_embedding.1} parent=11 // pred_check_branch
          %285 = sbr.rel (%p283) target = $region16
        $region15: #{node_feature_embedding.1} parent=11 // pred_region
          _
        $region16: #{node_feature_embedding.1} parent=11 // pred_fallthru
          _
        // Predicated region
        $region17: #{node_feature_embedding.1} parent=11 // pred_check
          %p286 = pneg %p137
        $region18: #{node_feature_embedding.1} parent=11 // pred_check_branch
          %288 = sbr.rel (%p286) target = $region20
        $region19: #{node_feature_embedding.1} parent=11 // pred_region
          _
        $region20: #{node_feature_embedding.1} parent=11 // pred_fallthru
          _
        // Predicated region
        $region21: #{node_feature_embedding.1} parent=11 // pred_check
          %p289 = pneg %p158
        $region22: #{node_feature_embedding.1} parent=11 // pred_check_branch
          %291 = sbr.rel (%p289) target = $region24
        $region23: #{node_feature_embedding.1} parent=11 // pred_region
          _
        $region24: #{node_feature_embedding.1} parent=11 // pred_fallthru
          _
        // Predicated region
        $region25: #{node_feature_embedding.1} parent=11 // pred_check
          %p292 = pneg %p179
        $region26: #{node_feature_embedding.1} parent=11 // pred_check_branch
          %294 = sbr.rel (%p292) target = $region28
        $region27: #{node_feature_embedding.1} parent=11 // pred_region
          _
        $region28: #{node_feature_embedding.1} parent=11 // pred_fallthru
          _
        // Predicated region
        $region29: #{node_feature_embedding.1} parent=11 // pred_check
          %p295 = pneg %p200
        $region30: #{node_feature_embedding.1} parent=11 // pred_check_branch
          %297 = sbr.rel (%p295) target = $region32
        $region31: #{node_feature_embedding.1} parent=11 // pred_region
          _
        $region32: #{node_feature_embedding.1} parent=11 // pred_fallthru
          _
        // Predicated region
        $region33: #{node_feature_embedding.1} parent=11 // pred_check
          %p298 = pneg %p221
        $region34: #{node_feature_embedding.1} parent=11 // pred_check_branch
          %300 = sbr.rel (%p298) target = $region36
        $region35: #{node_feature_embedding.1} parent=11 // pred_region
          _
        $region36: #{node_feature_embedding.1} parent=11 // pred_fallthru
          _
        // Predicated region
        $region37: #{node_feature_embedding.1} parent=11 // pred_check
          %p301 = pneg %p242
        $region38: #{node_feature_embedding.1} parent=11 // pred_check_branch
          %303 = sbr.rel (%p301) target = $region40
        $region39: #{node_feature_embedding.1} parent=11 // pred_region
          _
        $region40: #{node_feature_embedding.1} parent=11 // pred_fallthru
          _
      $region12: #{node_feature_embedding.1} parent=5 // pred_fallthru
        _
      %p304 = scmp.lt.s32.totalorder %s17, 2
      // Predicated region
      $region41: #{node_feature_embedding.1} parent=5 // pred_check
        %p305 = pneg %p304
      $region42: #{node_feature_embedding.1} parent=5 // pred_check_branch
        %307 = sbr.rel (%p305) target = $region44
      $region43: #{node_feature_embedding.1} parent=5 // pred_region
        // Predicated region
        $region45: #{node_feature_embedding.1} parent=43 // pred_check
          %p308 = pneg %p37
        $region46: #{node_feature_embedding.1} parent=43 // pred_check_branch
          %310 = sbr.rel (%p308) target = $region48
        $region47: #{node_feature_embedding.1} parent=43 // pred_region
          %s311 = smul.u32 16, %s17
          %s312 = ssub.s32 25, %s311
          %p313 = scmp.lt.s32.totalorder %s312, 16
          %s314 = scalar_select %p313, %s312, 16
          %s315 = smul.u32 64, %s314
          %p316 = scmp.lt.s32.totalorder %s311, 24
          %s317 = scalar_select %p316, %s311, 24
          %s318 = smul.addr %s317, 4
          %s319 = scalar_lea.vmem %s0, %s318
          %s320 = smul.u32 16, %s17
          %s321 = ssub.s32 25, %s320
          %p322 = scmp.lt.s32.totalorder %s321, 16
          %s323 = scalar_select %p322, %s321, 16
          %s324 = smul.u32 64, %s323
        $region48: #{node_feature_embedding.1} parent=43 // pred_fallthru
          _
        // Predicated region
        $region49: #{node_feature_embedding.1} parent=43 // pred_check
          %p325 = pneg %p63
        $region50: #{node_feature_embedding.1} parent=43 // pred_check_branch
          %327 = sbr.rel (%p325) target = $region52
        $region51: #{node_feature_embedding.1} parent=43 // pred_region
          %s328 = smul.u32 16, %s17
          %s329 = ssub.s32 25, %s328
          %p330 = scmp.lt.s32.totalorder %s329, 16
          %s331 = scalar_select %p330, %s329, 16
          %s332 = smul.u32 64, %s331
          %s333 = smul.u32 %s332, 6
          %p334 = scmp.lt.s32.totalorder %s328, 24
          %s335 = scalar_select %p334, %s328, 24
          %s336 = smul.addr %s335, 6
          %s337 = smul.addr %s336, 4
          %s338 = scalar_lea.vmem %s1, %s337
          %s339 = smul.u32 16, %s17
          %s340 = ssub.s32 25, %s339
          %p341 = scmp.lt.s32.totalorder %s340, 16
          %s342 = scalar_select %p341, %s340, 16
          %s343 = smul.u32 64, %s342
          %s344 = smul.u32 %s343, 6
        $region52: #{node_feature_embedding.1} parent=43 // pred_fallthru
          _
        // Predicated region
        $region53: #{node_feature_embedding.1} parent=43 // pred_check
          %p345 = pneg %p89
        $region54: #{node_feature_embedding.1} parent=43 // pred_check_branch
          %347 = sbr.rel (%p345) target = $region56
        $region55: #{node_feature_embedding.1} parent=43 // pred_region
          %s348 = smul.u32 16, %s17
          %s349 = ssub.s32 25, %s348
          %p350 = scmp.lt.s32.totalorder %s349, 16
          %s351 = scalar_select %p350, %s349, 16
          %s352 = smul.u32 64, %s351
          %s353 = smul.u32 %s352, 6
          %p354 = scmp.lt.s32.totalorder %s348, 24
          %s355 = scalar_select %p354, %s348, 24
          %s356 = smul.addr %s355, 6
          %s357 = smul.addr %s356, 4
          %s358 = scalar_lea.vmem %s2, %s357
          %s359 = smul.u32 16, %s17
          %s360 = ssub.s32 25, %s359
          %p361 = scmp.lt.s32.totalorder %s360, 16
          %s362 = scalar_select %p361, %s360, 16
          %s363 = smul.u32 64, %s362
          %s364 = smul.u32 %s363, 6
        $region56: #{node_feature_embedding.1} parent=43 // pred_fallthru
          _
      $region44: #{node_feature_embedding.1} parent=5 // pred_fallthru
        _
      %p365 = scmp.le.s32.totalorder 1, %s17
      %p366 = scmp.lt.s32.totalorder %s17, 3
      %p367 = pnand %p365, %p366
      %p368 = pneg %p367
      // Predicated region
      $region57: #{node_feature_embedding.1} parent=5 // pred_check
        _
      $region58: #{node_feature_embedding.1} parent=5 // pred_check_branch
        %370 = sbr.rel (%p367) target = $region60
      $region59: #{node_feature_embedding.1} parent=5 // pred_region
        %s371 = ssub.s32 %s17, 1
        %s372 = smul.u32 16, %s22
        %s373 = ssub.s32 25, %s372
        %p374 = scmp.lt.s32.totalorder %s373, 16
        %s375 = scalar_select %p374, %s373, 16
        %s376 = smul.u32 64, %s375
        %p377 = scmp.lt.s32.totalorder %s372, 24
        %s378 = scalar_select %p377, %s372, 24
        %s379 = smul.addr %s378, 4
        %s380 = scalar_lea.vmem %s0, %s379
        %p381 = pneg %p43
        %p382 = pneg %p40
        %s383 = smul.u32 16, %s22
        %s384 = ssub.s32 25, %s383
        %p385 = scmp.lt.s32.totalorder %s384, 16
        %s386 = scalar_select %p385, %s384, 16
        %s387 = smul.u32 64, %s386
        %s388 = smul.u32 %s387, 6
        %p389 = scmp.lt.s32.totalorder %s383, 24
        %s390 = scalar_select %p389, %s383, 24
        %s391 = smul.addr %s390, 6
        %s392 = smul.addr %s391, 4
        %s393 = scalar_lea.vmem %s1, %s392
        %p394 = pneg %p69
        %p395 = pneg %p66
        %s396 = smul.u32 16, %s22
        %s397 = ssub.s32 25, %s396
        %p398 = scmp.lt.s32.totalorder %s397, 16
        %s399 = scalar_select %p398, %s397, 16
        %s400 = smul.u32 64, %s399
        %s401 = smul.u32 %s400, 6
        %p402 = scmp.lt.s32.totalorder %s396, 24
        %s403 = scalar_select %p402, %s396, 24
        %s404 = smul.addr %s403, 6
        %s405 = smul.addr %s404, 4
        %s406 = scalar_lea.vmem %s2, %s405
        %p407 = pneg %p95
        %p408 = pneg %p92
        %p409 = pneg %p116
        %p410 = pneg %p113
        %p411 = pneg %p137
        %p412 = pneg %p134
        %p413 = pneg %p158
        %p414 = pneg %p155
        %p415 = pneg %p179
        %p416 = pneg %p176
        %p417 = pneg %p200
        %p418 = pneg %p197
        %p419 = pneg %p221
        %p420 = pneg %p218
        %p421 = pneg %p242
        %p422 = pneg %p239
        %p423 = pneg %p268
        %p424 = pneg %p265
        %s425 = sand.u32 %s255, 1
        %s426 = sand.u32 %s255, 1
        %s427 = smul.addr %s426, 128
        %s428 = scalar_lea.vmem [#allocation3], %s427
        %s429 = smul.u32 16, %s22
        %s430 = ssub.s32 25, %s429
        %p431 = scmp.lt.s32.totalorder %s430, 16
        %s432 = scalar_select %p431, %s430, 16
        %s433 = smul.u32 64, %s432
        %p434 = scmp.lt.s32.totalorder %s429, 24
        %s435 = scalar_select %p434, %s429, 24
        %s436 = smul.addr %s435, 4
        %s437 = scalar_lea.vmem %s0, %s436
        %s438 = smul.u32 16, %s22
        %s439 = ssub.s32 25, %s438
        %p440 = scmp.lt.s32.totalorder %s439, 16
        %s441 = scalar_select %p440, %s439, 16
        %s442 = smul.u32 64, %s441
        %s443 = smul.u32 16, %s22
        %s444 = ssub.s32 25, %s443
        %p445 = scmp.lt.s32.totalorder %s444, 16
        %s446 = scalar_select %p445, %s444, 16
        %s447 = smul.u32 64, %s446
        %s448 = smul.u32 %s447, 6
        %p449 = scmp.lt.s32.totalorder %s443, 24
        %s450 = scalar_select %p449, %s443, 24
        %s451 = smul.addr %s450, 6
        %s452 = smul.addr %s451, 4
        %s453 = scalar_lea.vmem %s1, %s452
        %s454 = smul.u32 16, %s22
        %s455 = ssub.s32 25, %s454
        %p456 = scmp.lt.s32.totalorder %s455, 16
        %s457 = scalar_select %p456, %s455, 16
        %s458 = smul.u32 64, %s457
        %s459 = smul.u32 %s458, 6
        %s460 = smul.u32 16, %s22
        %s461 = ssub.s32 25, %s460
        %p462 = scmp.lt.s32.totalorder %s461, 16
        %s463 = scalar_select %p462, %s461, 16
        %s464 = smul.u32 64, %s463
        %s465 = smul.u32 %s464, 6
        %p466 = scmp.lt.s32.totalorder %s460, 24
        %s467 = scalar_select %p466, %s460, 24
        %s468 = smul.addr %s467, 6
        %s469 = smul.addr %s468, 4
        %s470 = scalar_lea.vmem %s2, %s469
        %s471 = smul.u32 16, %s22
        %s472 = ssub.s32 25, %s471
        %p473 = scmp.lt.s32.totalorder %s472, 16
        %s474 = scalar_select %p473, %s472, 16
        %s475 = smul.u32 64, %s474
        %s476 = smul.u32 %s475, 6
        %s477 = smul.u32 16, %s22
        %s478 = ssub.s32 25, %s477
        %p479 = scmp.lt.s32.totalorder %s478, 16
        %s480 = scalar_select %p479, %s478, 16
        %s481 = smul.u32 128, %s480
        %s483 = sld [smem:[#allocation2]]
        %v484 = vld [vmem:[%s437] sm:$0xf]
        %v485 = vld [vmem:[%s437 + $0x4] sm:$0xf]
        %v486 = vld [vmem:[%s437 + $0x8] sm:$0xf]
        %v487 = vld [vmem:[%s437 + $0xc] sm:$0xf]
        %v488 = vld [vmem:[%s437 + $0x10] sm:$0xf]
        %v489 = vld [vmem:[%s437 + $0x14] sm:$0xf]
        %v490 = vld [vmem:[%s437 + $0x18] sm:$0xf]
        %v491 = vld [vmem:[%s437 + $0x1c] sm:$0xf]
        %v492 = vld [vmem:[%s437 + $0x20] sm:$0xf]
        %v493 = vld [vmem:[%s437 + $0x24] sm:$0xf]
        %v494 = vld [vmem:[%s437 + $0x28] sm:$0xf]
        %v495 = vld [vmem:[%s437 + $0x2c] sm:$0xf]
        %v496 = vld [vmem:[%s437 + $0x30] sm:$0xf]
        %v497 = vld [vmem:[%s437 + $0x34] sm:$0xf]
        %v498 = vld [vmem:[%s437 + $0x38] sm:$0xf]
        %v499 = vld [vmem:[%s437 + $0x3c] sm:$0xf]
        %v500 = vld [vmem:[%s3] sm:$0xf]
        %v501 = vld [vmem:[%s453] sm:$0xff]
        %v502 = vld [vmem:[%s453 + $0x8] sm:$0xff]
        %v503 = vld [vmem:[%s453 + $0x10] sm:$0xff]
        %v504 = vld [vmem:[%s453 + $0x18] sm:$0xff]
        %v505 = vld [vmem:[%s453 + $0x20] sm:$0xff]
        %v506 = vld [vmem:[%s453 + $0x28] sm:$0xff]
        %v507 = vld [vmem:[%s453 + $0x30] sm:$0xff]
        %v508 = vld [vmem:[%s453 + $0x38] sm:$0xff]
        %v509 = vld [vmem:[%s453 + $0x40] sm:$0xff]
        %v510 = vld [vmem:[%s453 + $0x48] sm:$0xff]
        %v511 = vld [vmem:[%s453 + $0x50] sm:$0xff]
        %v512 = vld [vmem:[%s453 + $0x58] sm:$0xff]
        %v513 = vld [vmem:[%s453 + $0x60] sm:$0xff]
        %v514 = vld [vmem:[%s453 + $0x68] sm:$0xff]
        %v515 = vld [vmem:[%s453 + $0x70] sm:$0xff]
        %v516 = vld [vmem:[%s453 + $0x78] sm:$0xff]
        %v517 = vld [vmem:[%s453 + $0x80] sm:$0xff]
        %v518 = vld [vmem:[%s453 + $0x88] sm:$0xff]
        %v519 = vld [vmem:[%s453 + $0x90] sm:$0xff]
        %v520 = vld [vmem:[%s453 + $0x98] sm:$0xff]
        %v521 = vld [vmem:[%s453 + $0xa0] sm:$0xff]
        %v522 = vld [vmem:[%s453 + $0xa8] sm:$0xff]
        %v523 = vld [vmem:[%s453 + $0xb0] sm:$0xff]
        %v524 = vld [vmem:[%s453 + $0xb8] sm:$0xff]
        %v525 = vld [vmem:[%s453 + $0xc0] sm:$0xff]
        %v526 = vld [vmem:[%s453 + $0xc8] sm:$0xff]
        %v527 = vld [vmem:[%s453 + $0xd0] sm:$0xff]
        %v528 = vld [vmem:[%s453 + $0xd8] sm:$0xff]
        %v529 = vld [vmem:[%s453 + $0xe0] sm:$0xff]
        %v530 = vld [vmem:[%s453 + $0xe8] sm:$0xff]
        %v531 = vld [vmem:[%s453 + $0xf0] sm:$0xff]
        %v532 = vld [vmem:[%s453 + $0xf8] sm:$0xff]
        %v533 = vld [vmem:[%s453 + $0x100] sm:$0xff]
        %v534 = vld [vmem:[%s453 + $0x108] sm:$0xff]
        %v535 = vld [vmem:[%s453 + $0x110] sm:$0xff]
        %v536 = vld [vmem:[%s453 + $0x118] sm:$0xff]
        %v537 = vld [vmem:[%s453 + $0x120] sm:$0xff]
        %v538 = vld [vmem:[%s453 + $0x128] sm:$0xff]
        %v539 = vld [vmem:[%s453 + $0x130] sm:$0xff]
        %v540 = vld [vmem:[%s453 + $0x138] sm:$0xff]
        %v541 = vld [vmem:[%s453 + $0x140] sm:$0xff]
        %v542 = vld [vmem:[%s453 + $0x148] sm:$0xff]
        %v543 = vld [vmem:[%s453 + $0x150] sm:$0xff]
        %v544 = vld [vmem:[%s453 + $0x158] sm:$0xff]
        %v545 = vld [vmem:[%s453 + $0x160] sm:$0xff]
        %v546 = vld [vmem:[%s453 + $0x168] sm:$0xff]
        %v547 = vld [vmem:[%s453 + $0x170] sm:$0xff]
        %v548 = vld [vmem:[%s453 + $0x178] sm:$0xff]
        %v549 = vld [vmem:[%s4] sm:$0xf]
        %v550 = vld [vmem:[%s4 + $0x4] sm:$0xf]
        %v551 = vld [vmem:[%s4 + $0x8] sm:$0xf]
        %v552 = vld [vmem:[%s4 + $0xc] sm:$0xf]
        %v553 = vld [vmem:[%s4 + $0x10] sm:$0xf]
        %v554 = vld [vmem:[%s4 + $0x14] sm:$0xf]
        %v555 = vld [vmem:[%s4 + $0x18] sm:$0xf]
        %v556 = vld [vmem:[%s4 + $0x1c] sm:$0xf]
        %v557 = vld [vmem:[%s4 + $0x20] sm:$0xf]
        %v558 = vld [vmem:[%s4 + $0x24] sm:$0xf]
        %v559 = vld [vmem:[%s4 + $0x28] sm:$0xf]
        %v560 = vld [vmem:[%s4 + $0x2c] sm:$0xf]
        %v561 = vld [vmem:[%s4 + $0x30] sm:$0xf]
        %v562 = vld [vmem:[%s4 + $0x34] sm:$0xf]
        %v563 = vld [vmem:[%s4 + $0x38] sm:$0xf]
        %v564 = vld [vmem:[%s4 + $0x3c] sm:$0xf]
        %v565 = vld [vmem:[%s4 + $0x40] sm:$0xf]
        %v566 = vld [vmem:[%s4 + $0x44] sm:$0xf]
        %v567 = vld [vmem:[%s4 + $0x48] sm:$0xf]
        %v568 = vld [vmem:[%s4 + $0x4c] sm:$0xf]
        %v569 = vld [vmem:[%s4 + $0x50] sm:$0xf]
        %v570 = vld [vmem:[%s4 + $0x54] sm:$0xf]
        %v571 = vld [vmem:[%s4 + $0x58] sm:$0xf]
        %v572 = vld [vmem:[%s4 + $0x5c] sm:$0xf]
        %v573 = vld [vmem:[%s4 + $0x60] sm:$0xf]
        %v574 = vld [vmem:[%s4 + $0x64] sm:$0xf]
        %v575 = vld [vmem:[%s4 + $0x68] sm:$0xf]
        %v576 = vld [vmem:[%s4 + $0x6c] sm:$0xf]
        %v577 = vld [vmem:[%s4 + $0x70] sm:$0xf]
        %v578 = vld [vmem:[%s4 + $0x74] sm:$0xf]
        %v579 = vld [vmem:[%s4 + $0x78] sm:$0xf]
        %v580 = vld [vmem:[%s4 + $0x7c] sm:$0xf]
        %v581 = vld [vmem:[%s4 + $0x80] sm:$0xf]
        %v582 = vld [vmem:[%s4 + $0x84] sm:$0xf]
        %v583 = vld [vmem:[%s4 + $0x88] sm:$0xf]
        %v584 = vld [vmem:[%s4 + $0x8c] sm:$0xf]
        %v585 = vld [vmem:[%s4 + $0x90] sm:$0xf]
        %v586 = vld [vmem:[%s4 + $0x94] sm:$0xf]
        %v587 = vld [vmem:[%s4 + $0x98] sm:$0xf]
        %v588 = vld [vmem:[%s4 + $0x9c] sm:$0xf]
        %v589 = vld [vmem:[%s4 + $0xa0] sm:$0xf]
        %v590 = vld [vmem:[%s4 + $0xa4] sm:$0xf]
        %v591 = vld [vmem:[%s4 + $0xa8] sm:$0xf]
        %v592 = vld [vmem:[%s4 + $0xac] sm:$0xf]
        %v593 = vld [vmem:[%s4 + $0xb0] sm:$0xf]
        %v594 = vld [vmem:[%s4 + $0xb4] sm:$0xf]
        %v595 = vld [vmem:[%s4 + $0xb8] sm:$0xf]
        %v596 = vld [vmem:[%s4 + $0xbc] sm:$0xf]
        %v597 = vld [vmem:[%s4 + $0xc0] sm:$0xf]
        %v598 = vld [vmem:[%s4 + $0xc4] sm:$0xf]
        %v599 = vld [vmem:[%s4 + $0xc8] sm:$0xf]
        %v600 = vld [vmem:[%s4 + $0xcc] sm:$0xf]
        %v601 = vld [vmem:[%s4 + $0xd0] sm:$0xf]
        %v602 = vld [vmem:[%s4 + $0xd4] sm:$0xf]
        %v603 = vld [vmem:[%s4 + $0xd8] sm:$0xf]
        %v604 = vld [vmem:[%s4 + $0xdc] sm:$0xf]
        %v605 = vld [vmem:[%s4 + $0xe0] sm:$0xf]
        %v606 = vld [vmem:[%s4 + $0xe4] sm:$0xf]
        %v607 = vld [vmem:[%s4 + $0xe8] sm:$0xf]
        %v608 = vld [vmem:[%s4 + $0xec] sm:$0xf]
        %v609 = vld [vmem:[%s4 + $0xf0] sm:$0xf]
        %v610 = vld [vmem:[%s4 + $0xf4] sm:$0xf]
        %v611 = vld [vmem:[%s4 + $0xf8] sm:$0xf]
        %v612 = vld [vmem:[%s4 + $0xfc] sm:$0xf]
        %v613 = vld [vmem:[%s4 + $0x100] sm:$0xf]
        %v614 = vld [vmem:[%s4 + $0x104] sm:$0xf]
        %v615 = vld [vmem:[%s4 + $0x108] sm:$0xf]
        %v616 = vld [vmem:[%s4 + $0x10c] sm:$0xf]
        %v617 = vld [vmem:[%s4 + $0x110] sm:$0xf]
        %v618 = vld [vmem:[%s4 + $0x114] sm:$0xf]
        %v619 = vld [vmem:[%s4 + $0x118] sm:$0xf]
        %v620 = vld [vmem:[%s4 + $0x11c] sm:$0xf]
        %v621 = vld [vmem:[%s4 + $0x120] sm:$0xf]
        %v622 = vld [vmem:[%s4 + $0x124] sm:$0xf]
        %v623 = vld [vmem:[%s4 + $0x128] sm:$0xf]
        %v624 = vld [vmem:[%s4 + $0x12c] sm:$0xf]
        %v625 = vld [vmem:[%s4 + $0x130] sm:$0xf]
        %v626 = vld [vmem:[%s4 + $0x134] sm:$0xf]
        %v627 = vld [vmem:[%s4 + $0x138] sm:$0xf]
        %v628 = vld [vmem:[%s4 + $0x13c] sm:$0xf]
        %v629 = vld [vmem:[%s4 + $0x140] sm:$0xf]
        %v630 = vld [vmem:[%s4 + $0x144] sm:$0xf]
        %v631 = vld [vmem:[%s4 + $0x148] sm:$0xf]
        %v632 = vld [vmem:[%s4 + $0x14c] sm:$0xf]
        %v633 = vld [vmem:[%s4 + $0x150] sm:$0xf]
        %v634 = vld [vmem:[%s4 + $0x154] sm:$0xf]
        %v635 = vld [vmem:[%s4 + $0x158] sm:$0xf]
        %v636 = vld [vmem:[%s4 + $0x15c] sm:$0xf]
        %v637 = vld [vmem:[%s4 + $0x160] sm:$0xf]
        %v638 = vld [vmem:[%s4 + $0x164] sm:$0xf]
        %v639 = vld [vmem:[%s4 + $0x168] sm:$0xf]
        %v640 = vld [vmem:[%s4 + $0x16c] sm:$0xf]
        %v641 = vld [vmem:[%s4 + $0x170] sm:$0xf]
        %v642 = vld [vmem:[%s4 + $0x174] sm:$0xf]
        %v643 = vld [vmem:[%s4 + $0x178] sm:$0xf]
        %v644 = vld [vmem:[%s4 + $0x17c] sm:$0xf]
        %v693 = vunpack.c.l.b16 %v501
        %v694 = vunpack.c.h.b16 %v501
        %v695 = vunpack.c.l.b16 %v502
        %v696 = vunpack.c.h.b16 %v502
        %v697 = vunpack.c.l.b16 %v503
        %v698 = vunpack.c.h.b16 %v503
        %v699 = vunpack.c.l.b16 %v504
        %v700 = vunpack.c.h.b16 %v504
        %v701 = vunpack.c.l.b16 %v505
        %v702 = vunpack.c.h.b16 %v505
        %v703 = vunpack.c.l.b16 %v506
        %v704 = vunpack.c.h.b16 %v506
        %v705 = vunpack.c.l.b16 %v507
        %v706 = vunpack.c.h.b16 %v507
        %v707 = vunpack.c.l.b16 %v508
        %v708 = vunpack.c.h.b16 %v508
        %v709 = vunpack.c.l.b16 %v509
        %v710 = vunpack.c.h.b16 %v509
        %v711 = vunpack.c.l.b16 %v510
        %v712 = vunpack.c.h.b16 %v510
        %v713 = vunpack.c.l.b16 %v511
        %v714 = vunpack.c.h.b16 %v511
        %v715 = vunpack.c.l.b16 %v512
        %v716 = vunpack.c.h.b16 %v512
        %v717 = vunpack.c.l.b16 %v513
        %v718 = vunpack.c.h.b16 %v513
        %v719 = vunpack.c.l.b16 %v514
        %v720 = vunpack.c.h.b16 %v514
        %v721 = vunpack.c.l.b16 %v515
        %v722 = vunpack.c.h.b16 %v515
        %v723 = vunpack.c.l.b16 %v516
        %v724 = vunpack.c.h.b16 %v516
        %v725 = vunpack.c.l.b16 %v517
        %v726 = vunpack.c.h.b16 %v517
        %v727 = vunpack.c.l.b16 %v518
        %v728 = vunpack.c.h.b16 %v518
        %v729 = vunpack.c.l.b16 %v519
        %v730 = vunpack.c.h.b16 %v519
        %v731 = vunpack.c.l.b16 %v520
        %v732 = vunpack.c.h.b16 %v520
        %v733 = vunpack.c.l.b16 %v521
        %v734 = vunpack.c.h.b16 %v521
        %v735 = vunpack.c.l.b16 %v522
        %v736 = vunpack.c.h.b16 %v522
        %v737 = vunpack.c.l.b16 %v523
        %v738 = vunpack.c.h.b16 %v523
        %v739 = vunpack.c.l.b16 %v524
        %v740 = vunpack.c.h.b16 %v524
        %v741 = vunpack.c.l.b16 %v525
        %v742 = vunpack.c.h.b16 %v525
        %v743 = vunpack.c.l.b16 %v526
        %v744 = vunpack.c.h.b16 %v526
        %v745 = vunpack.c.l.b16 %v527
        %v746 = vunpack.c.h.b16 %v527
        %v747 = vunpack.c.l.b16 %v528
        %v748 = vunpack.c.h.b16 %v528
        %v749 = vunpack.c.l.b16 %v529
        %v750 = vunpack.c.h.b16 %v529
        %v751 = vunpack.c.l.b16 %v530
        %v752 = vunpack.c.h.b16 %v530
        %v753 = vunpack.c.l.b16 %v531
        %v754 = vunpack.c.h.b16 %v531
        %v755 = vunpack.c.l.b16 %v532
        %v756 = vunpack.c.h.b16 %v532
        %v757 = vunpack.c.l.b16 %v533
        %v758 = vunpack.c.h.b16 %v533
        %v759 = vunpack.c.l.b16 %v534
        %v760 = vunpack.c.h.b16 %v534
        %v761 = vunpack.c.l.b16 %v535
        %v762 = vunpack.c.h.b16 %v535
        %v763 = vunpack.c.l.b16 %v536
        %v764 = vunpack.c.h.b16 %v536
        %v765 = vunpack.c.l.b16 %v537
        %v766 = vunpack.c.h.b16 %v537
        %v767 = vunpack.c.l.b16 %v538
        %v768 = vunpack.c.h.b16 %v538
        %v769 = vunpack.c.l.b16 %v539
        %v770 = vunpack.c.h.b16 %v539
        %v771 = vunpack.c.l.b16 %v540
        %v772 = vunpack.c.h.b16 %v540
        %v773 = vunpack.c.l.b16 %v541
        %v774 = vunpack.c.h.b16 %v541
        %v775 = vunpack.c.l.b16 %v542
        %v776 = vunpack.c.h.b16 %v542
        %v777 = vunpack.c.l.b16 %v543
        %v778 = vunpack.c.h.b16 %v543
        %v779 = vunpack.c.l.b16 %v544
        %v780 = vunpack.c.h.b16 %v544
        %v781 = vunpack.c.l.b16 %v545
        %v782 = vunpack.c.h.b16 %v545
        %v783 = vunpack.c.l.b16 %v546
        %v784 = vunpack.c.h.b16 %v546
        %v785 = vunpack.c.l.b16 %v547
        %v786 = vunpack.c.h.b16 %v547
        %v787 = vunpack.c.l.b16 %v548
        %v788 = vunpack.c.h.b16 %v548
        %v789 = vpack.c.b16 %v699, %v693
        %v790 = vpack.c.b16 %v700, %v694
        %v791 = vpack.c.b16 %v701, %v695
        %v792 = vpack.c.b16 %v702, %v696
        %v793 = vpack.c.b16 %v703, %v697
        %v794 = vpack.c.b16 %v704, %v698
        %v795 = vpack.c.b16 %v711, %v705
        %v796 = vpack.c.b16 %v712, %v706
        %v797 = vpack.c.b16 %v713, %v707
        %v798 = vpack.c.b16 %v714, %v708
        %v799 = vpack.c.b16 %v715, %v709
        %v800 = vpack.c.b16 %v716, %v710
        %v801 = vpack.c.b16 %v723, %v717
        %v802 = vpack.c.b16 %v724, %v718
        %v803 = vpack.c.b16 %v725, %v719
        %v804 = vpack.c.b16 %v726, %v720
        %v805 = vpack.c.b16 %v727, %v721
        %v806 = vpack.c.b16 %v728, %v722
        %v807 = vpack.c.b16 %v735, %v729
        %v808 = vpack.c.b16 %v736, %v730
        %v809 = vpack.c.b16 %v737, %v731
        %v810 = vpack.c.b16 %v738, %v732
        %v811 = vpack.c.b16 %v739, %v733
        %v812 = vpack.c.b16 %v740, %v734
        %v813 = vpack.c.b16 %v747, %v741
        %v814 = vpack.c.b16 %v748, %v742
        %v815 = vpack.c.b16 %v749, %v743
        %v816 = vpack.c.b16 %v750, %v744
        %v817 = vpack.c.b16 %v751, %v745
        %v818 = vpack.c.b16 %v752, %v746
        %v819 = vpack.c.b16 %v759, %v753
        %v820 = vpack.c.b16 %v760, %v754
        %v821 = vpack.c.b16 %v761, %v755
        %v822 = vpack.c.b16 %v762, %v756
        %v823 = vpack.c.b16 %v763, %v757
        %v824 = vpack.c.b16 %v764, %v758
        %v825 = vpack.c.b16 %v771, %v765
        %v826 = vpack.c.b16 %v772, %v766
        %v827 = vpack.c.b16 %v773, %v767
        %v828 = vpack.c.b16 %v774, %v768
        %v829 = vpack.c.b16 %v775, %v769
        %v830 = vpack.c.b16 %v776, %v770
        %v831 = vpack.c.b16 %v783, %v777
        %v832 = vpack.c.b16 %v784, %v778
        %v833 = vpack.c.b16 %v785, %v779
        %v834 = vpack.c.b16 %v786, %v780
        %v835 = vpack.c.b16 %v787, %v781
        %v836 = vpack.c.b16 %v788, %v782
        %v981 = vunpack.c.l.b16 %v549
        %v982 = vunpack.c.l.b16 %v550
        %v983 = vunpack.c.l.b16 %v551
        %v984 = vunpack.c.l.b16 %v552
        %v985 = vunpack.c.l.b16 %v553
        %v986 = vunpack.c.l.b16 %v554
        %v987 = vunpack.c.l.b16 %v555
        %v988 = vunpack.c.l.b16 %v556
        %v989 = vunpack.c.l.b16 %v557
        %v990 = vunpack.c.l.b16 %v558
        %v991 = vunpack.c.l.b16 %v559
        %v992 = vunpack.c.l.b16 %v560
        %v993 = vunpack.c.l.b16 %v561
        %v994 = vunpack.c.l.b16 %v562
        %v995 = vunpack.c.l.b16 %v563
        %v996 = vunpack.c.l.b16 %v564
        %v997 = vunpack.c.l.b16 %v565
        %v998 = vunpack.c.l.b16 %v566
        %v999 = vunpack.c.l.b16 %v567
        %v1000 = vunpack.c.l.b16 %v568
        %v1001 = vunpack.c.l.b16 %v569
        %v1002 = vunpack.c.l.b16 %v570
        %v1003 = vunpack.c.l.b16 %v571
        %v1004 = vunpack.c.l.b16 %v572
        %v1005 = vunpack.c.l.b16 %v573
        %v1006 = vunpack.c.l.b16 %v574
        %v1007 = vunpack.c.l.b16 %v575
        %v1008 = vunpack.c.l.b16 %v576
        %v1009 = vunpack.c.l.b16 %v577
        %v1010 = vunpack.c.l.b16 %v578
        %v1011 = vunpack.c.l.b16 %v579
        %v1012 = vunpack.c.l.b16 %v580
        %v1013 = vunpack.c.l.b16 %v581
        %v1014 = vunpack.c.l.b16 %v582
        %v1015 = vunpack.c.l.b16 %v583
        %v1016 = vunpack.c.l.b16 %v584
        %v1017 = vunpack.c.l.b16 %v585
        %v1018 = vunpack.c.l.b16 %v586
        %v1019 = vunpack.c.l.b16 %v587
        %v1020 = vunpack.c.l.b16 %v588
        %v1021 = vunpack.c.l.b16 %v589
        %v1022 = vunpack.c.l.b16 %v590
        %v1023 = vunpack.c.l.b16 %v591
        %v1024 = vunpack.c.l.b16 %v592
        %v1025 = vunpack.c.l.b16 %v593
        %v1026 = vunpack.c.l.b16 %v594
        %v1027 = vunpack.c.l.b16 %v595
        %v1028 = vunpack.c.l.b16 %v596
        %v1029 = vunpack.c.l.b16 %v597
        %v1030 = vunpack.c.l.b16 %v598
        %v1031 = vunpack.c.l.b16 %v599
        %v1032 = vunpack.c.l.b16 %v600
        %v1033 = vunpack.c.l.b16 %v601
        %v1034 = vunpack.c.l.b16 %v602
        %v1035 = vunpack.c.l.b16 %v603
        %v1036 = vunpack.c.l.b16 %v604
        %v1037 = vunpack.c.l.b16 %v605
        %v1038 = vunpack.c.l.b16 %v606
        %v1039 = vunpack.c.l.b16 %v607
        %v1040 = vunpack.c.l.b16 %v608
        %v1041 = vunpack.c.l.b16 %v609
        %v1042 = vunpack.c.l.b16 %v610
        %v1043 = vunpack.c.l.b16 %v611
        %v1044 = vunpack.c.l.b16 %v612
        %v1045 = vunpack.c.l.b16 %v613
        %v1046 = vunpack.c.l.b16 %v614
        %v1047 = vunpack.c.l.b16 %v615
        %v1048 = vunpack.c.l.b16 %v616
        %v1049 = vunpack.c.l.b16 %v617
        %v1050 = vunpack.c.l.b16 %v618
        %v1051 = vunpack.c.l.b16 %v619
        %v1052 = vunpack.c.l.b16 %v620
        %v1053 = vunpack.c.l.b16 %v621
        %v1054 = vunpack.c.l.b16 %v622
        %v1055 = vunpack.c.l.b16 %v623
        %v1056 = vunpack.c.l.b16 %v624
        %v1057 = vunpack.c.l.b16 %v625
        %v1058 = vunpack.c.l.b16 %v626
        %v1059 = vunpack.c.l.b16 %v627
        %v1060 = vunpack.c.l.b16 %v628
        %v1061 = vunpack.c.l.b16 %v629
        %v1062 = vunpack.c.l.b16 %v630
        %v1063 = vunpack.c.l.b16 %v631
        %v1064 = vunpack.c.l.b16 %v632
        %v1065 = vunpack.c.l.b16 %v633
        %v1066 = vunpack.c.l.b16 %v634
        %v1067 = vunpack.c.l.b16 %v635
        %v1068 = vunpack.c.l.b16 %v636
        %v1069 = vunpack.c.l.b16 %v637
        %v1070 = vunpack.c.l.b16 %v638
        %v1071 = vunpack.c.l.b16 %v639
        %v1072 = vunpack.c.l.b16 %v640
        %v1073 = vunpack.c.l.b16 %v641
        %v1074 = vunpack.c.l.b16 %v642
        %v1075 = vunpack.c.l.b16 %v643
        %v1076 = vunpack.c.l.b16 %v644
        %v1077 = vpack.c.b16 %v982, %v981
        %v1078 = vpack.c.b16 %v984, %v983
        %v1079 = vpack.c.b16 %v986, %v985
        %v1080 = vpack.c.b16 %v988, %v987
        %v1081 = vpack.c.b16 %v990, %v989
        %v1082 = vpack.c.b16 %v992, %v991
        %v1083 = vpack.c.b16 %v994, %v993
        %v1084 = vpack.c.b16 %v996, %v995
        %v1085 = vpack.c.b16 %v998, %v997
        %v1086 = vpack.c.b16 %v1000, %v999
        %v1087 = vpack.c.b16 %v1002, %v1001
        %v1088 = vpack.c.b16 %v1004, %v1003
        %v1089 = vpack.c.b16 %v1006, %v1005
        %v1090 = vpack.c.b16 %v1008, %v1007
        %v1091 = vpack.c.b16 %v1010, %v1009
        %v1092 = vpack.c.b16 %v1012, %v1011
        %v1093 = vpack.c.b16 %v1014, %v1013
        %v1094 = vpack.c.b16 %v1016, %v1015
        %v1095 = vpack.c.b16 %v1018, %v1017
        %v1096 = vpack.c.b16 %v1020, %v1019
        %v1097 = vpack.c.b16 %v1022, %v1021
        %v1098 = vpack.c.b16 %v1024, %v1023
        %v1099 = vpack.c.b16 %v1026, %v1025
        %v1100 = vpack.c.b16 %v1028, %v1027
        %v1101 = vpack.c.b16 %v1030, %v1029
        %v1102 = vpack.c.b16 %v1032, %v1031
        %v1103 = vpack.c.b16 %v1034, %v1033
        %v1104 = vpack.c.b16 %v1036, %v1035
        %v1105 = vpack.c.b16 %v1038, %v1037
        %v1106 = vpack.c.b16 %v1040, %v1039
        %v1107 = vpack.c.b16 %v1042, %v1041
        %v1108 = vpack.c.b16 %v1044, %v1043
        %v1109 = vpack.c.b16 %v1046, %v1045
        %v1110 = vpack.c.b16 %v1048, %v1047
        %v1111 = vpack.c.b16 %v1050, %v1049
        %v1112 = vpack.c.b16 %v1052, %v1051
        %v1113 = vpack.c.b16 %v1054, %v1053
        %v1114 = vpack.c.b16 %v1056, %v1055
        %v1115 = vpack.c.b16 %v1058, %v1057
        %v1116 = vpack.c.b16 %v1060, %v1059
        %v1117 = vpack.c.b16 %v1062, %v1061
        %v1118 = vpack.c.b16 %v1064, %v1063
        %v1119 = vpack.c.b16 %v1066, %v1065
        %v1120 = vpack.c.b16 %v1068, %v1067
        %v1121 = vpack.c.b16 %v1070, %v1069
        %v1122 = vpack.c.b16 %v1072, %v1071
        %v1123 = vpack.c.b16 %v1074, %v1073
        %v1124 = vpack.c.b16 %v1076, %v1075
        %1173 = vmatprep.subr.bf16.mxu0 0
        %1174 = vmatpush1.bf16.msra.mxu0 %v1084
        %1175 = vmatprep.subr.bf16.mxu0 0
        %1176 = vmatpush1.bf16.msra.mxu0 %v1083
        %1177 = vmatprep.subr.bf16.mxu0 0
        %1178 = vmatpush1.bf16.msra.mxu0 %v1082
        %1179 = vmatprep.subr.bf16.mxu0 0
        %1180 = vmatpush1.bf16.msra.mxu0 %v1081
        %1181 = vmatprep.subr.bf16.mxu0 0
        %1182 = vmatpush1.bf16.msra.mxu0 %v1080
        %1183 = vmatprep.subr.bf16.mxu0 0
        %1184 = vmatpush1.bf16.msra.mxu0 %v1079
        %1185 = vmatprep.subr.bf16.mxu0 0
        %1186 = vmatpush1.bf16.msra.mxu0 %v1078
        %1187 = vmatprep.subr.bf16.mxu0 0
        %1188 = vmatpush1.bf16.msra.mxu0 %v1077
        %1189 = vmatprep.subr.bf16.mxu0 0
        %1190 = vmatpush2.bf16.msra.mxu0 %v1092
        %1191 = vmatprep.subr.bf16.mxu0 0
        %1192 = vmatpush2.bf16.msra.mxu0 %v1091
        %1193 = vmatprep.subr.bf16.mxu0 0
        %1194 = vmatpush2.bf16.msra.mxu0 %v1090
        %1195 = vmatprep.subr.bf16.mxu0 0
        %1196 = vmatpush2.bf16.msra.mxu0 %v1089
        %1197 = vmatprep.subr.bf16.mxu0 0
        %1198 = vmatpush2.bf16.msra.mxu0 %v1088
        %1199 = vmatprep.subr.bf16.mxu0 0
        %1200 = vmatpush2.bf16.msra.mxu0 %v1087
        %1201 = vmatprep.subr.bf16.mxu0 0
        %1202 = vmatpush2.bf16.msra.mxu0 %v1086
        %1203 = vmatprep.subr.bf16.mxu0 0
        %1204 = vmatpush2.bf16.msra.mxu0 %v1085
        %1205 = vmatprep.mubr.bf16.mxu0 %v790
        %1206 = vmatmul.mubr.bf16.gmra.mxu0 %v789
        %v1207 = vpop.f32.mrf.mxu0
        %v1208 = vadd.f32 0.0, %v1207
        %v1209 = vpop.f32.mrf.mxu0
        %v1210 = vpop.f32.mrf.mxu0
        %v1211 = vadd.f32 0.0, %v1210
        %v1212 = vpop.f32.mrf.mxu0
        %1213 = vmatprep.mubr.bf16.mxu0 %v796
        %1214 = vmatmul.mubr.bf16.gmra.mxu0 %v795
        %v1215 = vpop.f32.mrf.mxu0
        %v1216 = vadd.f32 0.0, %v1215
        %v1217 = vpop.f32.mrf.mxu0
        %v1218 = vpop.f32.mrf.mxu0
        %v1219 = vadd.f32 0.0, %v1218
        %v1220 = vpop.f32.mrf.mxu0
        %1221 = vmatprep.mubr.bf16.mxu0 %v802
        %1222 = vmatmul.mubr.bf16.gmra.mxu0 %v801
        %v1223 = vpop.f32.mrf.mxu0
        %v1224 = vadd.f32 0.0, %v1223
        %v1225 = vpop.f32.mrf.mxu0
        %v1226 = vpop.f32.mrf.mxu0
        %v1227 = vadd.f32 0.0, %v1226
        %v1228 = vpop.f32.mrf.mxu0
        %1229 = vmatprep.mubr.bf16.mxu0 %v808
        %1230 = vmatmul.mubr.bf16.gmra.mxu0 %v807
        %v1231 = vpop.f32.mrf.mxu0
        %v1232 = vadd.f32 0.0, %v1231
        %v1233 = vpop.f32.mrf.mxu0
        %v1234 = vpop.f32.mrf.mxu0
        %v1235 = vadd.f32 0.0, %v1234
        %v1236 = vpop.f32.mrf.mxu0
        %1237 = vmatprep.mubr.bf16.mxu0 %v814
        %1238 = vmatmul.mubr.bf16.gmra.mxu0 %v813
        %v1239 = vpop.f32.mrf.mxu0
        %v1240 = vadd.f32 0.0, %v1239
        %v1241 = vpop.f32.mrf.mxu0
        %v1242 = vpop.f32.mrf.mxu0
        %v1243 = vadd.f32 0.0, %v1242
        %v1244 = vpop.f32.mrf.mxu0
        %1245 = vmatprep.mubr.bf16.mxu0 %v820
        %1246 = vmatmul.mubr.bf16.gmra.mxu0 %v819
        %v1247 = vpop.f32.mrf.mxu0
        %v1248 = vadd.f32 0.0, %v1247
        %v1249 = vpop.f32.mrf.mxu0
        %v1250 = vpop.f32.mrf.mxu0
        %v1251 = vadd.f32 0.0, %v1250
        %v1252 = vpop.f32.mrf.mxu0
        %1253 = vmatprep.mubr.bf16.mxu0 %v826
        %1254 = vmatmul.mubr.bf16.gmra.mxu0 %v825
        %v1255 = vpop.f32.mrf.mxu0
        %v1256 = vadd.f32 0.0, %v1255
        %v1257 = vpop.f32.mrf.mxu0
        %v1258 = vpop.f32.mrf.mxu0
        %v1259 = vadd.f32 0.0, %v1258
        %v1260 = vpop.f32.mrf.mxu0
        %1261 = vmatprep.mubr.bf16.mxu0 %v832
        %1262 = vmatmul.mubr.bf16.gmra.mxu0 %v831
        %v1263 = vpop.f32.mrf.mxu0
        %v1264 = vadd.f32 0.0, %v1263
        %v1265 = vpop.f32.mrf.mxu0
        %v1266 = vpop.f32.mrf.mxu0
        %v1267 = vadd.f32 0.0, %v1266
        %v1268 = vpop.f32.mrf.mxu0
        %1269 = vdwg.mxu0
        %1270 = vmatprep.subr.bf16.mxu0 0
        %1271 = vmatpush1.bf16.msra.mxu0 %v1100
        %1272 = vmatprep.subr.bf16.mxu0 0
        %1273 = vmatpush1.bf16.msra.mxu0 %v1099
        %1274 = vmatprep.subr.bf16.mxu0 0
        %1275 = vmatpush1.bf16.msra.mxu0 %v1098
        %1276 = vmatprep.subr.bf16.mxu0 0
        %1277 = vmatpush1.bf16.msra.mxu0 %v1097
        %1278 = vmatprep.subr.bf16.mxu0 0
        %1279 = vmatpush1.bf16.msra.mxu0 %v1096
        %1280 = vmatprep.subr.bf16.mxu0 0
        %1281 = vmatpush1.bf16.msra.mxu0 %v1095
        %1282 = vmatprep.subr.bf16.mxu0 0
        %1283 = vmatpush1.bf16.msra.mxu0 %v1094
        %1284 = vmatprep.subr.bf16.mxu0 0
        %1285 = vmatpush1.bf16.msra.mxu0 %v1093
        %1286 = vmatprep.subr.bf16.mxu0 0
        %1287 = vmatpush2.bf16.msra.mxu0 %v1108
        %1288 = vmatprep.subr.bf16.mxu0 0
        %1289 = vmatpush2.bf16.msra.mxu0 %v1107
        %1290 = vmatprep.subr.bf16.mxu0 0
        %1291 = vmatpush2.bf16.msra.mxu0 %v1106
        %1292 = vmatprep.subr.bf16.mxu0 0
        %1293 = vmatpush2.bf16.msra.mxu0 %v1105
        %1294 = vmatprep.subr.bf16.mxu0 0
        %1295 = vmatpush2.bf16.msra.mxu0 %v1104
        %1296 = vmatprep.subr.bf16.mxu0 0
        %1297 = vmatpush2.bf16.msra.mxu0 %v1103
        %1298 = vmatprep.subr.bf16.mxu0 0
        %1299 = vmatpush2.bf16.msra.mxu0 %v1102
        %1300 = vmatprep.subr.bf16.mxu0 0
        %1301 = vmatpush2.bf16.msra.mxu0 %v1101
        %1302 = vmatprep.mubr.bf16.mxu0 %v792
        %1303 = vmatmul.mubr.bf16.gmra.mxu0 %v791
        %v1304 = vpop.f32.mrf.mxu0
        %v1305 = vadd.f32 %v1208, %v1304
        %v1306 = vpop.f32.mrf.mxu0
        %v1307 = vpop.f32.mrf.mxu0
        %v1308 = vadd.f32 %v1211, %v1307
        %v1309 = vpop.f32.mrf.mxu0
        %1310 = vmatprep.mubr.bf16.mxu0 %v798
        %1311 = vmatmul.mubr.bf16.gmra.mxu0 %v797
        %v1312 = vpop.f32.mrf.mxu0
        %v1313 = vadd.f32 %v1216, %v1312
        %v1314 = vpop.f32.mrf.mxu0
        %v1315 = vpop.f32.mrf.mxu0
        %v1316 = vadd.f32 %v1219, %v1315
        %v1317 = vpop.f32.mrf.mxu0
        %1318 = vmatprep.mubr.bf16.mxu0 %v804
        %1319 = vmatmul.mubr.bf16.gmra.mxu0 %v803
        %v1320 = vpop.f32.mrf.mxu0
        %v1321 = vadd.f32 %v1224, %v1320
        %v1322 = vpop.f32.mrf.mxu0
        %v1323 = vpop.f32.mrf.mxu0
        %v1324 = vadd.f32 %v1227, %v1323
        %v1325 = vpop.f32.mrf.mxu0
        %1326 = vmatprep.mubr.bf16.mxu0 %v810
        %1327 = vmatmul.mubr.bf16.gmra.mxu0 %v809
        %v1328 = vpop.f32.mrf.mxu0
        %v1329 = vadd.f32 %v1232, %v1328
        %v1330 = vpop.f32.mrf.mxu0
        %v1331 = vpop.f32.mrf.mxu0
        %v1332 = vadd.f32 %v1235, %v1331
        %v1333 = vpop.f32.mrf.mxu0
        %1334 = vmatprep.mubr.bf16.mxu0 %v816
        %1335 = vmatmul.mubr.bf16.gmra.mxu0 %v815
        %v1336 = vpop.f32.mrf.mxu0
        %v1337 = vadd.f32 %v1240, %v1336
        %v1338 = vpop.f32.mrf.mxu0
        %v1339 = vpop.f32.mrf.mxu0
        %v1340 = vadd.f32 %v1243, %v1339
        %v1341 = vpop.f32.mrf.mxu0
        %1342 = vmatprep.mubr.bf16.mxu0 %v822
        %1343 = vmatmul.mubr.bf16.gmra.mxu0 %v821
        %v1344 = vpop.f32.mrf.mxu0
        %v1345 = vadd.f32 %v1248, %v1344
        %v1346 = vpop.f32.mrf.mxu0
        %v1347 = vpop.f32.mrf.mxu0
        %v1348 = vadd.f32 %v1251, %v1347
        %v1349 = vpop.f32.mrf.mxu0
        %1350 = vmatprep.mubr.bf16.mxu0 %v828
        %1351 = vmatmul.mubr.bf16.gmra.mxu0 %v827
        %v1352 = vpop.f32.mrf.mxu0
        %v1353 = vadd.f32 %v1256, %v1352
        %v1354 = vpop.f32.mrf.mxu0
        %v1355 = vpop.f32.mrf.mxu0
        %v1356 = vadd.f32 %v1259, %v1355
        %v1357 = vpop.f32.mrf.mxu0
        %1358 = vmatprep.mubr.bf16.mxu0 %v834
        %1359 = vmatmul.mubr.bf16.gmra.mxu0 %v833
        %v1360 = vpop.f32.mrf.mxu0
        %v1361 = vadd.f32 %v1264, %v1360
        %v1362 = vpop.f32.mrf.mxu0
        %v1363 = vpop.f32.mrf.mxu0
        %v1364 = vadd.f32 %v1267, %v1363
        %v1365 = vpop.f32.mrf.mxu0
        %1366 = vdwg.mxu0
        %1367 = vmatprep.subr.bf16.mxu0 0
        %1368 = vmatpush1.bf16.msra.mxu0 %v1116
        %1369 = vmatprep.subr.bf16.mxu0 0
        %1370 = vmatpush1.bf16.msra.mxu0 %v1115
        %1371 = vmatprep.subr.bf16.mxu0 0
        %1372 = vmatpush1.bf16.msra.mxu0 %v1114
        %1373 = vmatprep.subr.bf16.mxu0 0
        %1374 = vmatpush1.bf16.msra.mxu0 %v1113
        %1375 = vmatprep.subr.bf16.mxu0 0
        %1376 = vmatpush1.bf16.msra.mxu0 %v1112
        %1377 = vmatprep.subr.bf16.mxu0 0
        %1378 = vmatpush1.bf16.msra.mxu0 %v1111
        %1379 = vmatprep.subr.bf16.mxu0 0
        %1380 = vmatpush1.bf16.msra.mxu0 %v1110
        %1381 = vmatprep.subr.bf16.mxu0 0
        %1382 = vmatpush1.bf16.msra.mxu0 %v1109
        %1383 = vmatprep.subr.bf16.mxu0 0
        %1384 = vmatpush2.bf16.msra.mxu0 %v1124
        %1385 = vmatprep.subr.bf16.mxu0 0
        %1386 = vmatpush2.bf16.msra.mxu0 %v1123
        %1387 = vmatprep.subr.bf16.mxu0 0
        %1388 = vmatpush2.bf16.msra.mxu0 %v1122
        %1389 = vmatprep.subr.bf16.mxu0 0
        %1390 = vmatpush2.bf16.msra.mxu0 %v1121
        %1391 = vmatprep.subr.bf16.mxu0 0
        %1392 = vmatpush2.bf16.msra.mxu0 %v1120
        %1393 = vmatprep.subr.bf16.mxu0 0
        %1394 = vmatpush2.bf16.msra.mxu0 %v1119
        %1395 = vmatprep.subr.bf16.mxu0 0
        %1396 = vmatpush2.bf16.msra.mxu0 %v1118
        %1397 = vmatprep.subr.bf16.mxu0 0
        %1398 = vmatpush2.bf16.msra.mxu0 %v1117
        %1399 = vmatprep.mubr.bf16.mxu0 %v794
        %1400 = vmatmul.mubr.bf16.gmra.mxu0 %v793
        %v1401 = vpop.f32.mrf.mxu0
        %v1402 = vadd.f32 %v1305, %v1401
        %v1403 = vpop.f32.mrf.mxu0
        %v1404 = vpop.f32.mrf.mxu0
        %v1405 = vadd.f32 %v1308, %v1404
        %v1406 = vpop.f32.mrf.mxu0
        %1407 = vmatprep.mubr.bf16.mxu0 %v800
        %1408 = vmatmul.mubr.bf16.gmra.mxu0 %v799
        %v1409 = vpop.f32.mrf.mxu0
        %v1410 = vadd.f32 %v1313, %v1409
        %v1411 = vpop.f32.mrf.mxu0
        %v1412 = vpop.f32.mrf.mxu0
        %v1413 = vadd.f32 %v1316, %v1412
        %v1414 = vpop.f32.mrf.mxu0
        %1415 = vmatprep.mubr.bf16.mxu0 %v806
        %1416 = vmatmul.mubr.bf16.gmra.mxu0 %v805
        %v1417 = vpop.f32.mrf.mxu0
        %v1418 = vadd.f32 %v1321, %v1417
        %v1419 = vpop.f32.mrf.mxu0
        %v1420 = vpop.f32.mrf.mxu0
        %v1421 = vadd.f32 %v1324, %v1420
        %v1422 = vpop.f32.mrf.mxu0
        %1423 = vmatprep.mubr.bf16.mxu0 %v812
        %1424 = vmatmul.mubr.bf16.gmra.mxu0 %v811
        %v1425 = vpop.f32.mrf.mxu0
        %v1426 = vadd.f32 %v1329, %v1425
        %v1427 = vpop.f32.mrf.mxu0
        %v1428 = vpop.f32.mrf.mxu0
        %v1429 = vadd.f32 %v1332, %v1428
        %v1430 = vpop.f32.mrf.mxu0
        %1431 = vmatprep.mubr.bf16.mxu0 %v818
        %1432 = vmatmul.mubr.bf16.gmra.mxu0 %v817
        %v1433 = vpop.f32.mrf.mxu0
        %v1434 = vadd.f32 %v1337, %v1433
        %v1435 = vpop.f32.mrf.mxu0
        %v1436 = vpop.f32.mrf.mxu0
        %v1437 = vadd.f32 %v1340, %v1436
        %v1438 = vpop.f32.mrf.mxu0
        %1439 = vmatprep.mubr.bf16.mxu0 %v824
        %1440 = vmatmul.mubr.bf16.gmra.mxu0 %v823
        %v1441 = vpop.f32.mrf.mxu0
        %v1442 = vadd.f32 %v1345, %v1441
        %v1443 = vpop.f32.mrf.mxu0
        %v1444 = vpop.f32.mrf.mxu0
        %v1445 = vadd.f32 %v1348, %v1444
        %v1446 = vpop.f32.mrf.mxu0
        %1447 = vmatprep.mubr.bf16.mxu0 %v830
        %1448 = vmatmul.mubr.bf16.gmra.mxu0 %v829
        %v1449 = vpop.f32.mrf.mxu0
        %v1450 = vadd.f32 %v1353, %v1449
        %v1451 = vpop.f32.mrf.mxu0
        %v1452 = vpop.f32.mrf.mxu0
        %v1453 = vadd.f32 %v1356, %v1452
        %v1454 = vpop.f32.mrf.mxu0
        %1455 = vmatprep.mubr.bf16.mxu0 %v836
        %1456 = vmatmul.mubr.bf16.gmra.mxu0 %v835
        %v1457 = vpop.f32.mrf.mxu0
        %v1458 = vadd.f32 %v1361, %v1457
        %v1459 = vpop.f32.mrf.mxu0
        %v1460 = vpop.f32.mrf.mxu0
        %v1461 = vadd.f32 %v1364, %v1460
        %v1462 = vpop.f32.mrf.mxu0
        %1463 = vdwg.mxu0
        %v1480 = vunpack.c.l.b16 %v484
        %v1481 = vunpack.c.l.b16 %v485
        %v1482 = vunpack.c.l.b16 %v486
        %v1483 = vunpack.c.l.b16 %v487
        %v1484 = vunpack.c.l.b16 %v488
        %v1485 = vunpack.c.l.b16 %v489
        %v1486 = vunpack.c.l.b16 %v490
        %v1487 = vunpack.c.l.b16 %v491
        %v1488 = vunpack.c.l.b16 %v492
        %v1489 = vunpack.c.l.b16 %v493
        %v1490 = vunpack.c.l.b16 %v494
        %v1491 = vunpack.c.l.b16 %v495
        %v1492 = vunpack.c.l.b16 %v496
        %v1493 = vunpack.c.l.b16 %v497
        %v1494 = vunpack.c.l.b16 %v498
        %v1495 = vunpack.c.l.b16 %v499
        %v1496 = vpack.c.b16 %v1481, %v1480
        %v1497 = vpack.c.b16 %v1483, %v1482
        %v1498 = vpack.c.b16 %v1485, %v1484
        %v1499 = vpack.c.b16 %v1487, %v1486
        %v1500 = vpack.c.b16 %v1489, %v1488
        %v1501 = vpack.c.b16 %v1491, %v1490
        %v1502 = vpack.c.b16 %v1493, %v1492
        %v1503 = vpack.c.b16 %v1495, %v1494
        %vm1504 = vcmask 64512
        %v1506 = vsel %vm1504, %v1496, 0
        %v1509 = vsel %vm1504, %v1497, 0
        %v1512 = vsel %vm1504, %v1498, 0
        %v1515 = vsel %vm1504, %v1499, 0
        %v1518 = vsel %vm1504, %v1500, 0
        %v1521 = vsel %vm1504, %v1501, 0
        %v1524 = vsel %vm1504, %v1502, 0
        %v1527 = vsel %vm1504, %v1503, 0
        %vm1529 = vcmask 1043456
        %v1531 = vsel %vm1529, %v500, 0
        %1533 = vmatprep.subr.bf16.mxu0 0
        %1534 = vmatpush1.bf16.msra.mxu0 0
        %1535 = vmatprep.subr.bf16.mxu0 0
        %1536 = vmatpush1.bf16.msra.mxu0 0
        %1537 = vmatprep.subr.bf16.mxu0 0
        %1538 = vmatpush1.bf16.msra.mxu0 0
        %1539 = vmatprep.subr.bf16.mxu0 0
        %1540 = vmatpush1.bf16.msra.mxu0 0
        %1541 = vmatprep.subr.bf16.mxu0 0
        %1542 = vmatpush1.bf16.msra.mxu0 0
        %1543 = vmatprep.subr.bf16.mxu0 0
        %1544 = vmatpush1.bf16.msra.mxu0 0
        %1545 = vmatprep.subr.bf16.mxu0 0
        %1546 = vmatpush1.bf16.msra.mxu0 0
        %1547 = vmatprep.subr.bf16.mxu0 0
        %1548 = vmatpush1.bf16.msra.mxu0 %v1531
        %1549 = vmatprep.subr.bf16.mxu0 0
        %1550 = vmatpush2.bf16.msra.mxu0 0
        %1551 = vmatprep.subr.bf16.mxu0 0
        %1552 = vmatpush2.bf16.msra.mxu0 0
        %1553 = vmatprep.subr.bf16.mxu0 0
        %1554 = vmatpush2.bf16.msra.mxu0 0
        %1555 = vmatprep.subr.bf16.mxu0 0
        %1556 = vmatpush2.bf16.msra.mxu0 0
        %1557 = vmatprep.subr.bf16.mxu0 0
        %1558 = vmatpush2.bf16.msra.mxu0 0
        %1559 = vmatprep.subr.bf16.mxu0 0
        %1560 = vmatpush2.bf16.msra.mxu0 0
        %1561 = vmatprep.subr.bf16.mxu0 0
        %1562 = vmatpush2.bf16.msra.mxu0 0
        %1563 = vmatprep.subr.bf16.mxu0 0
        %1564 = vmatpush2.bf16.msra.mxu0 0
        %1565 = vmatprep.mubr.bf16.mxu0 0
        %1566 = vmatmul.mubr.bf16.gmra.mxu0 %v1506
        %v1567 = vpop.f32.mrf.mxu0
        %v1568 = vadd.f32 %v1402, %v1567
        %v1569 = vpop.f32.mrf.mxu0
        %v1570 = vpop.f32.mrf.mxu0
        %v1571 = vadd.f32 %v1405, %v1570
        %v1572 = vpop.f32.mrf.mxu0
        %1573 = vmatprep.mubr.bf16.mxu0 0
        %1574 = vmatmul.mubr.bf16.gmra.mxu0 %v1509
        %v1575 = vpop.f32.mrf.mxu0
        %v1576 = vadd.f32 %v1410, %v1575
        %v1577 = vpop.f32.mrf.mxu0
        %v1578 = vpop.f32.mrf.mxu0
        %v1579 = vadd.f32 %v1413, %v1578
        %v1580 = vpop.f32.mrf.mxu0
        %1581 = vmatprep.mubr.bf16.mxu0 0
        %1582 = vmatmul.mubr.bf16.gmra.mxu0 %v1512
        %v1583 = vpop.f32.mrf.mxu0
        %v1584 = vadd.f32 %v1418, %v1583
        %v1585 = vpop.f32.mrf.mxu0
        %v1586 = vpop.f32.mrf.mxu0
        %v1587 = vadd.f32 %v1421, %v1586
        %v1588 = vpop.f32.mrf.mxu0
        %1589 = vmatprep.mubr.bf16.mxu0 0
        %1590 = vmatmul.mubr.bf16.gmra.mxu0 %v1515
        %v1591 = vpop.f32.mrf.mxu0
        %v1592 = vadd.f32 %v1426, %v1591
        %v1593 = vpop.f32.mrf.mxu0
        %v1594 = vpop.f32.mrf.mxu0
        %v1595 = vadd.f32 %v1429, %v1594
        %v1596 = vpop.f32.mrf.mxu0
        %1597 = vmatprep.mubr.bf16.mxu0 0
        %1598 = vmatmul.mubr.bf16.gmra.mxu0 %v1518
        %v1599 = vpop.f32.mrf.mxu0
        %v1600 = vadd.f32 %v1434, %v1599
        %v1601 = vpop.f32.mrf.mxu0
        %v1602 = vpop.f32.mrf.mxu0
        %v1603 = vadd.f32 %v1437, %v1602
        %v1604 = vpop.f32.mrf.mxu0
        %1605 = vmatprep.mubr.bf16.mxu0 0
        %1606 = vmatmul.mubr.bf16.gmra.mxu0 %v1521
        %v1607 = vpop.f32.mrf.mxu0
        %v1608 = vadd.f32 %v1442, %v1607
        %v1609 = vpop.f32.mrf.mxu0
        %v1610 = vpop.f32.mrf.mxu0
        %v1611 = vadd.f32 %v1445, %v1610
        %v1612 = vpop.f32.mrf.mxu0
        %1613 = vmatprep.mubr.bf16.mxu0 0
        %1614 = vmatmul.mubr.bf16.gmra.mxu0 %v1524
        %v1615 = vpop.f32.mrf.mxu0
        %v1616 = vadd.f32 %v1450, %v1615
        %v1617 = vpop.f32.mrf.mxu0
        %v1618 = vpop.f32.mrf.mxu0
        %v1619 = vadd.f32 %v1453, %v1618
        %v1620 = vpop.f32.mrf.mxu0
        %1621 = vmatprep.mubr.bf16.mxu0 0
        %1622 = vmatmul.mubr.bf16.gmra.mxu0 %v1527
        %v1623 = vpop.f32.mrf.mxu0
        %v1624 = vadd.f32 %v1458, %v1623
        %v1625 = vpop.f32.mrf.mxu0
        %v1626 = vpop.f32.mrf.mxu0
        %v1627 = vadd.f32 %v1461, %v1626
        %v1628 = vpop.f32.mrf.mxu0
        %1629 = vdwg.mxu0
        %v1630 = vld [vmem:[%s470] sm:$0xff]
        %v1631 = vld [vmem:[%s470 + $0x8] sm:$0xff]
        %v1632 = vld [vmem:[%s470 + $0x10] sm:$0xff]
        %v1633 = vld [vmem:[%s470 + $0x18] sm:$0xff]
        %v1634 = vld [vmem:[%s470 + $0x20] sm:$0xff]
        %v1635 = vld [vmem:[%s470 + $0x28] sm:$0xff]
        %v1636 = vld [vmem:[%s470 + $0x30] sm:$0xff]
        %v1637 = vld [vmem:[%s470 + $0x38] sm:$0xff]
        %v1638 = vld [vmem:[%s470 + $0x40] sm:$0xff]
        %v1639 = vld [vmem:[%s470 + $0x48] sm:$0xff]
        %v1640 = vld [vmem:[%s470 + $0x50] sm:$0xff]
        %v1641 = vld [vmem:[%s470 + $0x58] sm:$0xff]
        %v1642 = vld [vmem:[%s470 + $0x60] sm:$0xff]
        %v1643 = vld [vmem:[%s470 + $0x68] sm:$0xff]
        %v1644 = vld [vmem:[%s470 + $0x70] sm:$0xff]
        %v1645 = vld [vmem:[%s470 + $0x78] sm:$0xff]
        %v1646 = vld [vmem:[%s470 + $0x80] sm:$0xff]
        %v1647 = vld [vmem:[%s470 + $0x88] sm:$0xff]
        %v1648 = vld [vmem:[%s470 + $0x90] sm:$0xff]
        %v1649 = vld [vmem:[%s470 + $0x98] sm:$0xff]
        %v1650 = vld [vmem:[%s470 + $0xa0] sm:$0xff]
        %v1651 = vld [vmem:[%s470 + $0xa8] sm:$0xff]
        %v1652 = vld [vmem:[%s470 + $0xb0] sm:$0xff]
        %v1653 = vld [vmem:[%s470 + $0xb8] sm:$0xff]
        %v1654 = vld [vmem:[%s470 + $0xc0] sm:$0xff]
        %v1655 = vld [vmem:[%s470 + $0xc8] sm:$0xff]
        %v1656 = vld [vmem:[%s470 + $0xd0] sm:$0xff]
        %v1657 = vld [vmem:[%s470 + $0xd8] sm:$0xff]
        %v1658 = vld [vmem:[%s470 + $0xe0] sm:$0xff]
        %v1659 = vld [vmem:[%s470 + $0xe8] sm:$0xff]
        %v1660 = vld [vmem:[%s470 + $0xf0] sm:$0xff]
        %v1661 = vld [vmem:[%s470 + $0xf8] sm:$0xff]
        %v1662 = vld [vmem:[%s470 + $0x100] sm:$0xff]
        %v1663 = vld [vmem:[%s470 + $0x108] sm:$0xff]
        %v1664 = vld [vmem:[%s470 + $0x110] sm:$0xff]
        %v1665 = vld [vmem:[%s470 + $0x118] sm:$0xff]
        %v1666 = vld [vmem:[%s470 + $0x120] sm:$0xff]
        %v1667 = vld [vmem:[%s470 + $0x128] sm:$0xff]
        %v1668 = vld [vmem:[%s470 + $0x130] sm:$0xff]
        %v1669 = vld [vmem:[%s470 + $0x138] sm:$0xff]
        %v1670 = vld [vmem:[%s470 + $0x140] sm:$0xff]
        %v1671 = vld [vmem:[%s470 + $0x148] sm:$0xff]
        %v1672 = vld [vmem:[%s470 + $0x150] sm:$0xff]
        %v1673 = vld [vmem:[%s470 + $0x158] sm:$0xff]
        %v1674 = vld [vmem:[%s470 + $0x160] sm:$0xff]
        %v1675 = vld [vmem:[%s470 + $0x168] sm:$0xff]
        %v1676 = vld [vmem:[%s470 + $0x170] sm:$0xff]
        %v1677 = vld [vmem:[%s470 + $0x178] sm:$0xff]
        %v1678 = vld [vmem:[%s5] sm:$0xf]
        %v1679 = vld [vmem:[%s5 + $0x4] sm:$0xf]
        %v1680 = vld [vmem:[%s5 + $0x8] sm:$0xf]
        %v1681 = vld [vmem:[%s5 + $0xc] sm:$0xf]
        %v1682 = vld [vmem:[%s5 + $0x10] sm:$0xf]
        %v1683 = vld [vmem:[%s5 + $0x14] sm:$0xf]
        %v1684 = vld [vmem:[%s5 + $0x18] sm:$0xf]
        %v1685 = vld [vmem:[%s5 + $0x1c] sm:$0xf]
        %v1686 = vld [vmem:[%s5 + $0x20] sm:$0xf]
        %v1687 = vld [vmem:[%s5 + $0x24] sm:$0xf]
        %v1688 = vld [vmem:[%s5 + $0x28] sm:$0xf]
        %v1689 = vld [vmem:[%s5 + $0x2c] sm:$0xf]
        %v1690 = vld [vmem:[%s5 + $0x30] sm:$0xf]
        %v1691 = vld [vmem:[%s5 + $0x34] sm:$0xf]
        %v1692 = vld [vmem:[%s5 + $0x38] sm:$0xf]
        %v1693 = vld [vmem:[%s5 + $0x3c] sm:$0xf]
        %v1694 = vld [vmem:[%s5 + $0x40] sm:$0xf]
        %v1695 = vld [vmem:[%s5 + $0x44] sm:$0xf]
        %v1696 = vld [vmem:[%s5 + $0x48] sm:$0xf]
        %v1697 = vld [vmem:[%s5 + $0x4c] sm:$0xf]
        %v1698 = vld [vmem:[%s5 + $0x50] sm:$0xf]
        %v1699 = vld [vmem:[%s5 + $0x54] sm:$0xf]
        %v1700 = vld [vmem:[%s5 + $0x58] sm:$0xf]
        %v1701 = vld [vmem:[%s5 + $0x5c] sm:$0xf]
        %v1702 = vld [vmem:[%s5 + $0x60] sm:$0xf]
        %v1703 = vld [vmem:[%s5 + $0x64] sm:$0xf]
        %v1704 = vld [vmem:[%s5 + $0x68] sm:$0xf]
        %v1705 = vld [vmem:[%s5 + $0x6c] sm:$0xf]
        %v1706 = vld [vmem:[%s5 + $0x70] sm:$0xf]
        %v1707 = vld [vmem:[%s5 + $0x74] sm:$0xf]
        %v1708 = vld [vmem:[%s5 + $0x78] sm:$0xf]
        %v1709 = vld [vmem:[%s5 + $0x7c] sm:$0xf]
        %v1710 = vld [vmem:[%s5 + $0x80] sm:$0xf]
        %v1711 = vld [vmem:[%s5 + $0x84] sm:$0xf]
        %v1712 = vld [vmem:[%s5 + $0x88] sm:$0xf]
        %v1713 = vld [vmem:[%s5 + $0x8c] sm:$0xf]
        %v1714 = vld [vmem:[%s5 + $0x90] sm:$0xf]
        %v1715 = vld [vmem:[%s5 + $0x94] sm:$0xf]
        %v1716 = vld [vmem:[%s5 + $0x98] sm:$0xf]
        %v1717 = vld [vmem:[%s5 + $0x9c] sm:$0xf]
        %v1718 = vld [vmem:[%s5 + $0xa0] sm:$0xf]
        %v1719 = vld [vmem:[%s5 + $0xa4] sm:$0xf]
        %v1720 = vld [vmem:[%s5 + $0xa8] sm:$0xf]
        %v1721 = vld [vmem:[%s5 + $0xac] sm:$0xf]
        %v1722 = vld [vmem:[%s5 + $0xb0] sm:$0xf]
        %v1723 = vld [vmem:[%s5 + $0xb4] sm:$0xf]
        %v1724 = vld [vmem:[%s5 + $0xb8] sm:$0xf]
        %v1725 = vld [vmem:[%s5 + $0xbc] sm:$0xf]
        %v1726 = vld [vmem:[%s5 + $0xc0] sm:$0xf]
        %v1727 = vld [vmem:[%s5 + $0xc4] sm:$0xf]
        %v1728 = vld [vmem:[%s5 + $0xc8] sm:$0xf]
        %v1729 = vld [vmem:[%s5 + $0xcc] sm:$0xf]
        %v1730 = vld [vmem:[%s5 + $0xd0] sm:$0xf]
        %v1731 = vld [vmem:[%s5 + $0xd4] sm:$0xf]
        %v1732 = vld [vmem:[%s5 + $0xd8] sm:$0xf]
        %v1733 = vld [vmem:[%s5 + $0xdc] sm:$0xf]
        %v1734 = vld [vmem:[%s5 + $0xe0] sm:$0xf]
        %v1735 = vld [vmem:[%s5 + $0xe4] sm:$0xf]
        %v1736 = vld [vmem:[%s5 + $0xe8] sm:$0xf]
        %v1737 = vld [vmem:[%s5 + $0xec] sm:$0xf]
        %v1738 = vld [vmem:[%s5 + $0xf0] sm:$0xf]
        %v1739 = vld [vmem:[%s5 + $0xf4] sm:$0xf]
        %v1740 = vld [vmem:[%s5 + $0xf8] sm:$0xf]
        %v1741 = vld [vmem:[%s5 + $0xfc] sm:$0xf]
        %v1742 = vld [vmem:[%s5 + $0x100] sm:$0xf]
        %v1743 = vld [vmem:[%s5 + $0x104] sm:$0xf]
        %v1744 = vld [vmem:[%s5 + $0x108] sm:$0xf]
        %v1745 = vld [vmem:[%s5 + $0x10c] sm:$0xf]
        %v1746 = vld [vmem:[%s5 + $0x110] sm:$0xf]
        %v1747 = vld [vmem:[%s5 + $0x114] sm:$0xf]
        %v1748 = vld [vmem:[%s5 + $0x118] sm:$0xf]
        %v1749 = vld [vmem:[%s5 + $0x11c] sm:$0xf]
        %v1750 = vld [vmem:[%s5 + $0x120] sm:$0xf]
        %v1751 = vld [vmem:[%s5 + $0x124] sm:$0xf]
        %v1752 = vld [vmem:[%s5 + $0x128] sm:$0xf]
        %v1753 = vld [vmem:[%s5 + $0x12c] sm:$0xf]
        %v1754 = vld [vmem:[%s5 + $0x130] sm:$0xf]
        %v1755 = vld [vmem:[%s5 + $0x134] sm:$0xf]
        %v1756 = vld [vmem:[%s5 + $0x138] sm:$0xf]
        %v1757 = vld [vmem:[%s5 + $0x13c] sm:$0xf]
        %v1758 = vld [vmem:[%s5 + $0x140] sm:$0xf]
        %v1759 = vld [vmem:[%s5 + $0x144] sm:$0xf]
        %v1760 = vld [vmem:[%s5 + $0x148] sm:$0xf]
        %v1761 = vld [vmem:[%s5 + $0x14c] sm:$0xf]
        %v1762 = vld [vmem:[%s5 + $0x150] sm:$0xf]
        %v1763 = vld [vmem:[%s5 + $0x154] sm:$0xf]
        %v1764 = vld [vmem:[%s5 + $0x158] sm:$0xf]
        %v1765 = vld [vmem:[%s5 + $0x15c] sm:$0xf]
        %v1766 = vld [vmem:[%s5 + $0x160] sm:$0xf]
        %v1767 = vld [vmem:[%s5 + $0x164] sm:$0xf]
        %v1768 = vld [vmem:[%s5 + $0x168] sm:$0xf]
        %v1769 = vld [vmem:[%s5 + $0x16c] sm:$0xf]
        %v1770 = vld [vmem:[%s5 + $0x170] sm:$0xf]
        %v1771 = vld [vmem:[%s5 + $0x174] sm:$0xf]
        %v1772 = vld [vmem:[%s5 + $0x178] sm:$0xf]
        %v1773 = vld [vmem:[%s5 + $0x17c] sm:$0xf]
        %v1822 = vunpack.c.l.b16 %v1630
        %v1823 = vunpack.c.h.b16 %v1630
        %v1824 = vunpack.c.l.b16 %v1631
        %v1825 = vunpack.c.h.b16 %v1631
        %v1826 = vunpack.c.l.b16 %v1632
        %v1827 = vunpack.c.h.b16 %v1632
        %v1828 = vunpack.c.l.b16 %v1633
        %v1829 = vunpack.c.h.b16 %v1633
        %v1830 = vunpack.c.l.b16 %v1634
        %v1831 = vunpack.c.h.b16 %v1634
        %v1832 = vunpack.c.l.b16 %v1635
        %v1833 = vunpack.c.h.b16 %v1635
        %v1834 = vunpack.c.l.b16 %v1636
        %v1835 = vunpack.c.h.b16 %v1636
        %v1836 = vunpack.c.l.b16 %v1637
        %v1837 = vunpack.c.h.b16 %v1637
        %v1838 = vunpack.c.l.b16 %v1638
        %v1839 = vunpack.c.h.b16 %v1638
        %v1840 = vunpack.c.l.b16 %v1639
        %v1841 = vunpack.c.h.b16 %v1639
        %v1842 = vunpack.c.l.b16 %v1640
        %v1843 = vunpack.c.h.b16 %v1640
        %v1844 = vunpack.c.l.b16 %v1641
        %v1845 = vunpack.c.h.b16 %v1641
        %v1846 = vunpack.c.l.b16 %v1642
        %v1847 = vunpack.c.h.b16 %v1642
        %v1848 = vunpack.c.l.b16 %v1643
        %v1849 = vunpack.c.h.b16 %v1643
        %v1850 = vunpack.c.l.b16 %v1644
        %v1851 = vunpack.c.h.b16 %v1644
        %v1852 = vunpack.c.l.b16 %v1645
        %v1853 = vunpack.c.h.b16 %v1645
        %v1854 = vunpack.c.l.b16 %v1646
        %v1855 = vunpack.c.h.b16 %v1646
        %v1856 = vunpack.c.l.b16 %v1647
        %v1857 = vunpack.c.h.b16 %v1647
        %v1858 = vunpack.c.l.b16 %v1648
        %v1859 = vunpack.c.h.b16 %v1648
        %v1860 = vunpack.c.l.b16 %v1649
        %v1861 = vunpack.c.h.b16 %v1649
        %v1862 = vunpack.c.l.b16 %v1650
        %v1863 = vunpack.c.h.b16 %v1650
        %v1864 = vunpack.c.l.b16 %v1651
        %v1865 = vunpack.c.h.b16 %v1651
        %v1866 = vunpack.c.l.b16 %v1652
        %v1867 = vunpack.c.h.b16 %v1652
        %v1868 = vunpack.c.l.b16 %v1653
        %v1869 = vunpack.c.h.b16 %v1653
        %v1870 = vunpack.c.l.b16 %v1654
        %v1871 = vunpack.c.h.b16 %v1654
        %v1872 = vunpack.c.l.b16 %v1655
        %v1873 = vunpack.c.h.b16 %v1655
        %v1874 = vunpack.c.l.b16 %v1656
        %v1875 = vunpack.c.h.b16 %v1656
        %v1876 = vunpack.c.l.b16 %v1657
        %v1877 = vunpack.c.h.b16 %v1657
        %v1878 = vunpack.c.l.b16 %v1658
        %v1879 = vunpack.c.h.b16 %v1658
        %v1880 = vunpack.c.l.b16 %v1659
        %v1881 = vunpack.c.h.b16 %v1659
        %v1882 = vunpack.c.l.b16 %v1660
        %v1883 = vunpack.c.h.b16 %v1660
        %v1884 = vunpack.c.l.b16 %v1661
        %v1885 = vunpack.c.h.b16 %v1661
        %v1886 = vunpack.c.l.b16 %v1662
        %v1887 = vunpack.c.h.b16 %v1662
        %v1888 = vunpack.c.l.b16 %v1663
        %v1889 = vunpack.c.h.b16 %v1663
        %v1890 = vunpack.c.l.b16 %v1664
        %v1891 = vunpack.c.h.b16 %v1664
        %v1892 = vunpack.c.l.b16 %v1665
        %v1893 = vunpack.c.h.b16 %v1665
        %v1894 = vunpack.c.l.b16 %v1666
        %v1895 = vunpack.c.h.b16 %v1666
        %v1896 = vunpack.c.l.b16 %v1667
        %v1897 = vunpack.c.h.b16 %v1667
        %v1898 = vunpack.c.l.b16 %v1668
        %v1899 = vunpack.c.h.b16 %v1668
        %v1900 = vunpack.c.l.b16 %v1669
        %v1901 = vunpack.c.h.b16 %v1669
        %v1902 = vunpack.c.l.b16 %v1670
        %v1903 = vunpack.c.h.b16 %v1670
        %v1904 = vunpack.c.l.b16 %v1671
        %v1905 = vunpack.c.h.b16 %v1671
        %v1906 = vunpack.c.l.b16 %v1672
        %v1907 = vunpack.c.h.b16 %v1672
        %v1908 = vunpack.c.l.b16 %v1673
        %v1909 = vunpack.c.h.b16 %v1673
        %v1910 = vunpack.c.l.b16 %v1674
        %v1911 = vunpack.c.h.b16 %v1674
        %v1912 = vunpack.c.l.b16 %v1675
        %v1913 = vunpack.c.h.b16 %v1675
        %v1914 = vunpack.c.l.b16 %v1676
        %v1915 = vunpack.c.h.b16 %v1676
        %v1916 = vunpack.c.l.b16 %v1677
        %v1917 = vunpack.c.h.b16 %v1677
        %v1918 = vpack.c.b16 %v1828, %v1822
        %v1919 = vpack.c.b16 %v1829, %v1823
        %v1920 = vpack.c.b16 %v1830, %v1824
        %v1921 = vpack.c.b16 %v1831, %v1825
        %v1922 = vpack.c.b16 %v1832, %v1826
        %v1923 = vpack.c.b16 %v1833, %v1827
        %v1924 = vpack.c.b16 %v1840, %v1834
        %v1925 = vpack.c.b16 %v1841, %v1835
        %v1926 = vpack.c.b16 %v1842, %v1836
        %v1927 = vpack.c.b16 %v1843, %v1837
        %v1928 = vpack.c.b16 %v1844, %v1838
        %v1929 = vpack.c.b16 %v1845, %v1839
        %v1930 = vpack.c.b16 %v1852, %v1846
        %v1931 = vpack.c.b16 %v1853, %v1847
        %v1932 = vpack.c.b16 %v1854, %v1848
        %v1933 = vpack.c.b16 %v1855, %v1849
        %v1934 = vpack.c.b16 %v1856, %v1850
        %v1935 = vpack.c.b16 %v1857, %v1851
        %v1936 = vpack.c.b16 %v1864, %v1858
        %v1937 = vpack.c.b16 %v1865, %v1859
        %v1938 = vpack.c.b16 %v1866, %v1860
        %v1939 = vpack.c.b16 %v1867, %v1861
        %v1940 = vpack.c.b16 %v1868, %v1862
        %v1941 = vpack.c.b16 %v1869, %v1863
        %v1942 = vpack.c.b16 %v1876, %v1870
        %v1943 = vpack.c.b16 %v1877, %v1871
        %v1944 = vpack.c.b16 %v1878, %v1872
        %v1945 = vpack.c.b16 %v1879, %v1873
        %v1946 = vpack.c.b16 %v1880, %v1874
        %v1947 = vpack.c.b16 %v1881, %v1875
        %v1948 = vpack.c.b16 %v1888, %v1882
        %v1949 = vpack.c.b16 %v1889, %v1883
        %v1950 = vpack.c.b16 %v1890, %v1884
        %v1951 = vpack.c.b16 %v1891, %v1885
        %v1952 = vpack.c.b16 %v1892, %v1886
        %v1953 = vpack.c.b16 %v1893, %v1887
        %v1954 = vpack.c.b16 %v1900, %v1894
        %v1955 = vpack.c.b16 %v1901, %v1895
        %v1956 = vpack.c.b16 %v1902, %v1896
        %v1957 = vpack.c.b16 %v1903, %v1897
        %v1958 = vpack.c.b16 %v1904, %v1898
        %v1959 = vpack.c.b16 %v1905, %v1899
        %v1960 = vpack.c.b16 %v1912, %v1906
        %v1961 = vpack.c.b16 %v1913, %v1907
        %v1962 = vpack.c.b16 %v1914, %v1908
        %v1963 = vpack.c.b16 %v1915, %v1909
        %v1964 = vpack.c.b16 %v1916, %v1910
        %v1965 = vpack.c.b16 %v1917, %v1911
        %v2110 = vunpack.c.l.b16 %v1678
        %v2111 = vunpack.c.l.b16 %v1679
        %v2112 = vunpack.c.l.b16 %v1680
        %v2113 = vunpack.c.l.b16 %v1681
        %v2114 = vunpack.c.l.b16 %v1682
        %v2115 = vunpack.c.l.b16 %v1683
        %v2116 = vunpack.c.l.b16 %v1684
        %v2117 = vunpack.c.l.b16 %v1685
        %v2118 = vunpack.c.l.b16 %v1686
        %v2119 = vunpack.c.l.b16 %v1687
        %v2120 = vunpack.c.l.b16 %v1688
        %v2121 = vunpack.c.l.b16 %v1689
        %v2122 = vunpack.c.l.b16 %v1690
        %v2123 = vunpack.c.l.b16 %v1691
        %v2124 = vunpack.c.l.b16 %v1692
        %v2125 = vunpack.c.l.b16 %v1693
        %v2126 = vunpack.c.l.b16 %v1694
        %v2127 = vunpack.c.l.b16 %v1695
        %v2128 = vunpack.c.l.b16 %v1696
        %v2129 = vunpack.c.l.b16 %v1697
        %v2130 = vunpack.c.l.b16 %v1698
        %v2131 = vunpack.c.l.b16 %v1699
        %v2132 = vunpack.c.l.b16 %v1700
        %v2133 = vunpack.c.l.b16 %v1701
        %v2134 = vunpack.c.l.b16 %v1702
        %v2135 = vunpack.c.l.b16 %v1703
        %v2136 = vunpack.c.l.b16 %v1704
        %v2137 = vunpack.c.l.b16 %v1705
        %v2138 = vunpack.c.l.b16 %v1706
        %v2139 = vunpack.c.l.b16 %v1707
        %v2140 = vunpack.c.l.b16 %v1708
        %v2141 = vunpack.c.l.b16 %v1709
        %v2142 = vunpack.c.l.b16 %v1710
        %v2143 = vunpack.c.l.b16 %v1711
        %v2144 = vunpack.c.l.b16 %v1712
        %v2145 = vunpack.c.l.b16 %v1713
        %v2146 = vunpack.c.l.b16 %v1714
        %v2147 = vunpack.c.l.b16 %v1715
        %v2148 = vunpack.c.l.b16 %v1716
        %v2149 = vunpack.c.l.b16 %v1717
        %v2150 = vunpack.c.l.b16 %v1718
        %v2151 = vunpack.c.l.b16 %v1719
        %v2152 = vunpack.c.l.b16 %v1720
        %v2153 = vunpack.c.l.b16 %v1721
        %v2154 = vunpack.c.l.b16 %v1722
        %v2155 = vunpack.c.l.b16 %v1723
        %v2156 = vunpack.c.l.b16 %v1724
        %v2157 = vunpack.c.l.b16 %v1725
        %v2158 = vunpack.c.l.b16 %v1726
        %v2159 = vunpack.c.l.b16 %v1727
        %v2160 = vunpack.c.l.b16 %v1728
        %v2161 = vunpack.c.l.b16 %v1729
        %v2162 = vunpack.c.l.b16 %v1730
        %v2163 = vunpack.c.l.b16 %v1731
        %v2164 = vunpack.c.l.b16 %v1732
        %v2165 = vunpack.c.l.b16 %v1733
        %v2166 = vunpack.c.l.b16 %v1734
        %v2167 = vunpack.c.l.b16 %v1735
        %v2168 = vunpack.c.l.b16 %v1736
        %v2169 = vunpack.c.l.b16 %v1737
        %v2170 = vunpack.c.l.b16 %v1738
        %v2171 = vunpack.c.l.b16 %v1739
        %v2172 = vunpack.c.l.b16 %v1740
        %v2173 = vunpack.c.l.b16 %v1741
        %v2174 = vunpack.c.l.b16 %v1742
        %v2175 = vunpack.c.l.b16 %v1743
        %v2176 = vunpack.c.l.b16 %v1744
        %v2177 = vunpack.c.l.b16 %v1745
        %v2178 = vunpack.c.l.b16 %v1746
        %v2179 = vunpack.c.l.b16 %v1747
        %v2180 = vunpack.c.l.b16 %v1748
        %v2181 = vunpack.c.l.b16 %v1749
        %v2182 = vunpack.c.l.b16 %v1750
        %v2183 = vunpack.c.l.b16 %v1751
        %v2184 = vunpack.c.l.b16 %v1752
        %v2185 = vunpack.c.l.b16 %v1753
        %v2186 = vunpack.c.l.b16 %v1754
        %v2187 = vunpack.c.l.b16 %v1755
        %v2188 = vunpack.c.l.b16 %v1756
        %v2189 = vunpack.c.l.b16 %v1757
        %v2190 = vunpack.c.l.b16 %v1758
        %v2191 = vunpack.c.l.b16 %v1759
        %v2192 = vunpack.c.l.b16 %v1760
        %v2193 = vunpack.c.l.b16 %v1761
        %v2194 = vunpack.c.l.b16 %v1762
        %v2195 = vunpack.c.l.b16 %v1763
        %v2196 = vunpack.c.l.b16 %v1764
        %v2197 = vunpack.c.l.b16 %v1765
        %v2198 = vunpack.c.l.b16 %v1766
        %v2199 = vunpack.c.l.b16 %v1767
        %v2200 = vunpack.c.l.b16 %v1768
        %v2201 = vunpack.c.l.b16 %v1769
        %v2202 = vunpack.c.l.b16 %v1770
        %v2203 = vunpack.c.l.b16 %v1771
        %v2204 = vunpack.c.l.b16 %v1772
        %v2205 = vunpack.c.l.b16 %v1773
        %v2206 = vpack.c.b16 %v2111, %v2110
        %v2207 = vpack.c.b16 %v2113, %v2112
        %v2208 = vpack.c.b16 %v2115, %v2114
        %v2209 = vpack.c.b16 %v2117, %v2116
        %v2210 = vpack.c.b16 %v2119, %v2118
        %v2211 = vpack.c.b16 %v2121, %v2120
        %v2212 = vpack.c.b16 %v2123, %v2122
        %v2213 = vpack.c.b16 %v2125, %v2124
        %v2214 = vpack.c.b16 %v2127, %v2126
        %v2215 = vpack.c.b16 %v2129, %v2128
        %v2216 = vpack.c.b16 %v2131, %v2130
        %v2217 = vpack.c.b16 %v2133, %v2132
        %v2218 = vpack.c.b16 %v2135, %v2134
        %v2219 = vpack.c.b16 %v2137, %v2136
        %v2220 = vpack.c.b16 %v2139, %v2138
        %v2221 = vpack.c.b16 %v2141, %v2140
        %v2222 = vpack.c.b16 %v2143, %v2142
        %v2223 = vpack.c.b16 %v2145, %v2144
        %v2224 = vpack.c.b16 %v2147, %v2146
        %v2225 = vpack.c.b16 %v2149, %v2148
        %v2226 = vpack.c.b16 %v2151, %v2150
        %v2227 = vpack.c.b16 %v2153, %v2152
        %v2228 = vpack.c.b16 %v2155, %v2154
        %v2229 = vpack.c.b16 %v2157, %v2156
        %v2230 = vpack.c.b16 %v2159, %v2158
        %v2231 = vpack.c.b16 %v2161, %v2160
        %v2232 = vpack.c.b16 %v2163, %v2162
        %v2233 = vpack.c.b16 %v2165, %v2164
        %v2234 = vpack.c.b16 %v2167, %v2166
        %v2235 = vpack.c.b16 %v2169, %v2168
        %v2236 = vpack.c.b16 %v2171, %v2170
        %v2237 = vpack.c.b16 %v2173, %v2172
        %v2238 = vpack.c.b16 %v2175, %v2174
        %v2239 = vpack.c.b16 %v2177, %v2176
        %v2240 = vpack.c.b16 %v2179, %v2178
        %v2241 = vpack.c.b16 %v2181, %v2180
        %v2242 = vpack.c.b16 %v2183, %v2182
        %v2243 = vpack.c.b16 %v2185, %v2184
        %v2244 = vpack.c.b16 %v2187, %v2186
        %v2245 = vpack.c.b16 %v2189, %v2188
        %v2246 = vpack.c.b16 %v2191, %v2190
        %v2247 = vpack.c.b16 %v2193, %v2192
        %v2248 = vpack.c.b16 %v2195, %v2194
        %v2249 = vpack.c.b16 %v2197, %v2196
        %v2250 = vpack.c.b16 %v2199, %v2198
        %v2251 = vpack.c.b16 %v2201, %v2200
        %v2252 = vpack.c.b16 %v2203, %v2202
        %v2253 = vpack.c.b16 %v2205, %v2204
        %2302 = vmatprep.subr.bf16.mxu0 0
        %2303 = vmatpush1.bf16.msra.mxu0 %v2213
        %2304 = vmatprep.subr.bf16.mxu0 0
        %2305 = vmatpush1.bf16.msra.mxu0 %v2212
        %2306 = vmatprep.subr.bf16.mxu0 0
        %2307 = vmatpush1.bf16.msra.mxu0 %v2211
        %2308 = vmatprep.subr.bf16.mxu0 0
        %2309 = vmatpush1.bf16.msra.mxu0 %v2210
        %2310 = vmatprep.subr.bf16.mxu0 0
        %2311 = vmatpush1.bf16.msra.mxu0 %v2209
        %2312 = vmatprep.subr.bf16.mxu0 0
        %2313 = vmatpush1.bf16.msra.mxu0 %v2208
        %2314 = vmatprep.subr.bf16.mxu0 0
        %2315 = vmatpush1.bf16.msra.mxu0 %v2207
        %2316 = vmatprep.subr.bf16.mxu0 0
        %2317 = vmatpush1.bf16.msra.mxu0 %v2206
        %2318 = vmatprep.subr.bf16.mxu0 0
        %2319 = vmatpush2.bf16.msra.mxu0 %v2221
        %2320 = vmatprep.subr.bf16.mxu0 0
        %2321 = vmatpush2.bf16.msra.mxu0 %v2220
        %2322 = vmatprep.subr.bf16.mxu0 0
        %2323 = vmatpush2.bf16.msra.mxu0 %v2219
        %2324 = vmatprep.subr.bf16.mxu0 0
        %2325 = vmatpush2.bf16.msra.mxu0 %v2218
        %2326 = vmatprep.subr.bf16.mxu0 0
        %2327 = vmatpush2.bf16.msra.mxu0 %v2217
        %2328 = vmatprep.subr.bf16.mxu0 0
        %2329 = vmatpush2.bf16.msra.mxu0 %v2216
        %2330 = vmatprep.subr.bf16.mxu0 0
        %2331 = vmatpush2.bf16.msra.mxu0 %v2215
        %2332 = vmatprep.subr.bf16.mxu0 0
        %2333 = vmatpush2.bf16.msra.mxu0 %v2214
        %2334 = vmatprep.mubr.bf16.mxu0 %v1919
        %2335 = vmatmul.mubr.bf16.gmra.mxu0 %v1918
        %v2336 = vpop.f32.mrf.mxu0
        %v2337 = vadd.f32 0.0, %v2336
        %v2338 = vpop.f32.mrf.mxu0
        %v2339 = vpop.f32.mrf.mxu0
        %v2340 = vadd.f32 0.0, %v2339
        %v2341 = vpop.f32.mrf.mxu0
        %2342 = vmatprep.mubr.bf16.mxu0 %v1925
        %2343 = vmatmul.mubr.bf16.gmra.mxu0 %v1924
        %v2344 = vpop.f32.mrf.mxu0
        %v2345 = vadd.f32 0.0, %v2344
        %v2346 = vpop.f32.mrf.mxu0
        %v2347 = vpop.f32.mrf.mxu0
        %v2348 = vadd.f32 0.0, %v2347
        %v2349 = vpop.f32.mrf.mxu0
        %2350 = vmatprep.mubr.bf16.mxu0 %v1931
        %2351 = vmatmul.mubr.bf16.gmra.mxu0 %v1930
        %v2352 = vpop.f32.mrf.mxu0
        %v2353 = vadd.f32 0.0, %v2352
        %v2354 = vpop.f32.mrf.mxu0
        %v2355 = vpop.f32.mrf.mxu0
        %v2356 = vadd.f32 0.0, %v2355
        %v2357 = vpop.f32.mrf.mxu0
        %2358 = vmatprep.mubr.bf16.mxu0 %v1937
        %2359 = vmatmul.mubr.bf16.gmra.mxu0 %v1936
        %v2360 = vpop.f32.mrf.mxu0
        %v2361 = vadd.f32 0.0, %v2360
        %v2362 = vpop.f32.mrf.mxu0
        %v2363 = vpop.f32.mrf.mxu0
        %v2364 = vadd.f32 0.0, %v2363
        %v2365 = vpop.f32.mrf.mxu0
        %2366 = vmatprep.mubr.bf16.mxu0 %v1943
        %2367 = vmatmul.mubr.bf16.gmra.mxu0 %v1942
        %v2368 = vpop.f32.mrf.mxu0
        %v2369 = vadd.f32 0.0, %v2368
        %v2370 = vpop.f32.mrf.mxu0
        %v2371 = vpop.f32.mrf.mxu0
        %v2372 = vadd.f32 0.0, %v2371
        %v2373 = vpop.f32.mrf.mxu0
        %2374 = vmatprep.mubr.bf16.mxu0 %v1949
        %2375 = vmatmul.mubr.bf16.gmra.mxu0 %v1948
        %v2376 = vpop.f32.mrf.mxu0
        %v2377 = vadd.f32 0.0, %v2376
        %v2378 = vpop.f32.mrf.mxu0
        %v2379 = vpop.f32.mrf.mxu0
        %v2380 = vadd.f32 0.0, %v2379
        %v2381 = vpop.f32.mrf.mxu0
        %2382 = vmatprep.mubr.bf16.mxu0 %v1955
        %2383 = vmatmul.mubr.bf16.gmra.mxu0 %v1954
        %v2384 = vpop.f32.mrf.mxu0
        %v2385 = vadd.f32 0.0, %v2384
        %v2386 = vpop.f32.mrf.mxu0
        %v2387 = vpop.f32.mrf.mxu0
        %v2388 = vadd.f32 0.0, %v2387
        %v2389 = vpop.f32.mrf.mxu0
        %2390 = vmatprep.mubr.bf16.mxu0 %v1961
        %2391 = vmatmul.mubr.bf16.gmra.mxu0 %v1960
        %v2392 = vpop.f32.mrf.mxu0
        %v2393 = vadd.f32 0.0, %v2392
        %v2394 = vpop.f32.mrf.mxu0
        %v2395 = vpop.f32.mrf.mxu0
        %v2396 = vadd.f32 0.0, %v2395
        %v2397 = vpop.f32.mrf.mxu0
        %2398 = vdwg.mxu0
        %2399 = vmatprep.subr.bf16.mxu0 0
        %2400 = vmatpush1.bf16.msra.mxu0 %v2229
        %2401 = vmatprep.subr.bf16.mxu0 0
        %2402 = vmatpush1.bf16.msra.mxu0 %v2228
        %2403 = vmatprep.subr.bf16.mxu0 0
        %2404 = vmatpush1.bf16.msra.mxu0 %v2227
        %2405 = vmatprep.subr.bf16.mxu0 0
        %2406 = vmatpush1.bf16.msra.mxu0 %v2226
        %2407 = vmatprep.subr.bf16.mxu0 0
        %2408 = vmatpush1.bf16.msra.mxu0 %v2225
        %2409 = vmatprep.subr.bf16.mxu0 0
        %2410 = vmatpush1.bf16.msra.mxu0 %v2224
        %2411 = vmatprep.subr.bf16.mxu0 0
        %2412 = vmatpush1.bf16.msra.mxu0 %v2223
        %2413 = vmatprep.subr.bf16.mxu0 0
        %2414 = vmatpush1.bf16.msra.mxu0 %v2222
        %2415 = vmatprep.subr.bf16.mxu0 0
        %2416 = vmatpush2.bf16.msra.mxu0 %v2237
        %2417 = vmatprep.subr.bf16.mxu0 0
        %2418 = vmatpush2.bf16.msra.mxu0 %v2236
        %2419 = vmatprep.subr.bf16.mxu0 0
        %2420 = vmatpush2.bf16.msra.mxu0 %v2235
        %2421 = vmatprep.subr.bf16.mxu0 0
        %2422 = vmatpush2.bf16.msra.mxu0 %v2234
        %2423 = vmatprep.subr.bf16.mxu0 0
        %2424 = vmatpush2.bf16.msra.mxu0 %v2233
        %2425 = vmatprep.subr.bf16.mxu0 0
        %2426 = vmatpush2.bf16.msra.mxu0 %v2232
        %2427 = vmatprep.subr.bf16.mxu0 0
        %2428 = vmatpush2.bf16.msra.mxu0 %v2231
        %2429 = vmatprep.subr.bf16.mxu0 0
        %2430 = vmatpush2.bf16.msra.mxu0 %v2230
        %2431 = vmatprep.mubr.bf16.mxu0 %v1921
        %2432 = vmatmul.mubr.bf16.gmra.mxu0 %v1920
        %v2433 = vpop.f32.mrf.mxu0
        %v2434 = vadd.f32 %v2337, %v2433
        %v2435 = vpop.f32.mrf.mxu0
        %v2436 = vpop.f32.mrf.mxu0
        %v2437 = vadd.f32 %v2340, %v2436
        %v2438 = vpop.f32.mrf.mxu0
        %2439 = vmatprep.mubr.bf16.mxu0 %v1927
        %2440 = vmatmul.mubr.bf16.gmra.mxu0 %v1926
        %v2441 = vpop.f32.mrf.mxu0
        %v2442 = vadd.f32 %v2345, %v2441
        %v2443 = vpop.f32.mrf.mxu0
        %v2444 = vpop.f32.mrf.mxu0
        %v2445 = vadd.f32 %v2348, %v2444
        %v2446 = vpop.f32.mrf.mxu0
        %2447 = vmatprep.mubr.bf16.mxu0 %v1933
        %2448 = vmatmul.mubr.bf16.gmra.mxu0 %v1932
        %v2449 = vpop.f32.mrf.mxu0
        %v2450 = vadd.f32 %v2353, %v2449
        %v2451 = vpop.f32.mrf.mxu0
        %v2452 = vpop.f32.mrf.mxu0
        %v2453 = vadd.f32 %v2356, %v2452
        %v2454 = vpop.f32.mrf.mxu0
        %2455 = vmatprep.mubr.bf16.mxu0 %v1939
        %2456 = vmatmul.mubr.bf16.gmra.mxu0 %v1938
        %v2457 = vpop.f32.mrf.mxu0
        %v2458 = vadd.f32 %v2361, %v2457
        %v2459 = vpop.f32.mrf.mxu0
        %v2460 = vpop.f32.mrf.mxu0
        %v2461 = vadd.f32 %v2364, %v2460
        %v2462 = vpop.f32.mrf.mxu0
        %2463 = vmatprep.mubr.bf16.mxu0 %v1945
        %2464 = vmatmul.mubr.bf16.gmra.mxu0 %v1944
        %v2465 = vpop.f32.mrf.mxu0
        %v2466 = vadd.f32 %v2369, %v2465
        %v2467 = vpop.f32.mrf.mxu0
        %v2468 = vpop.f32.mrf.mxu0
        %v2469 = vadd.f32 %v2372, %v2468
        %v2470 = vpop.f32.mrf.mxu0
        %2471 = vmatprep.mubr.bf16.mxu0 %v1951
        %2472 = vmatmul.mubr.bf16.gmra.mxu0 %v1950
        %v2473 = vpop.f32.mrf.mxu0
        %v2474 = vadd.f32 %v2377, %v2473
        %v2475 = vpop.f32.mrf.mxu0
        %v2476 = vpop.f32.mrf.mxu0
        %v2477 = vadd.f32 %v2380, %v2476
        %v2478 = vpop.f32.mrf.mxu0
        %2479 = vmatprep.mubr.bf16.mxu0 %v1957
        %2480 = vmatmul.mubr.bf16.gmra.mxu0 %v1956
        %v2481 = vpop.f32.mrf.mxu0
        %v2482 = vadd.f32 %v2385, %v2481
        %v2483 = vpop.f32.mrf.mxu0
        %v2484 = vpop.f32.mrf.mxu0
        %v2485 = vadd.f32 %v2388, %v2484
        %v2486 = vpop.f32.mrf.mxu0
        %2487 = vmatprep.mubr.bf16.mxu0 %v1963
        %2488 = vmatmul.mubr.bf16.gmra.mxu0 %v1962
        %v2489 = vpop.f32.mrf.mxu0
        %v2490 = vadd.f32 %v2393, %v2489
        %v2491 = vpop.f32.mrf.mxu0
        %v2492 = vpop.f32.mrf.mxu0
        %v2493 = vadd.f32 %v2396, %v2492
        %v2494 = vpop.f32.mrf.mxu0
        %2495 = vdwg.mxu0
        %2496 = vmatprep.subr.bf16.mxu0 0
        %2497 = vmatpush1.bf16.msra.mxu0 %v2245
        %2498 = vmatprep.subr.bf16.mxu0 0
        %2499 = vmatpush1.bf16.msra.mxu0 %v2244
        %2500 = vmatprep.subr.bf16.mxu0 0
        %2501 = vmatpush1.bf16.msra.mxu0 %v2243
        %2502 = vmatprep.subr.bf16.mxu0 0
        %2503 = vmatpush1.bf16.msra.mxu0 %v2242
        %2504 = vmatprep.subr.bf16.mxu0 0
        %2505 = vmatpush1.bf16.msra.mxu0 %v2241
        %2506 = vmatprep.subr.bf16.mxu0 0
        %2507 = vmatpush1.bf16.msra.mxu0 %v2240
        %2508 = vmatprep.subr.bf16.mxu0 0
        %2509 = vmatpush1.bf16.msra.mxu0 %v2239
        %2510 = vmatprep.subr.bf16.mxu0 0
        %2511 = vmatpush1.bf16.msra.mxu0 %v2238
        %2512 = vmatprep.subr.bf16.mxu0 0
        %2513 = vmatpush2.bf16.msra.mxu0 %v2253
        %2514 = vmatprep.subr.bf16.mxu0 0
        %2515 = vmatpush2.bf16.msra.mxu0 %v2252
        %2516 = vmatprep.subr.bf16.mxu0 0
        %2517 = vmatpush2.bf16.msra.mxu0 %v2251
        %2518 = vmatprep.subr.bf16.mxu0 0
        %2519 = vmatpush2.bf16.msra.mxu0 %v2250
        %2520 = vmatprep.subr.bf16.mxu0 0
        %2521 = vmatpush2.bf16.msra.mxu0 %v2249
        %2522 = vmatprep.subr.bf16.mxu0 0
        %2523 = vmatpush2.bf16.msra.mxu0 %v2248
        %2524 = vmatprep.subr.bf16.mxu0 0
        %2525 = vmatpush2.bf16.msra.mxu0 %v2247
        %2526 = vmatprep.subr.bf16.mxu0 0
        %2527 = vmatpush2.bf16.msra.mxu0 %v2246
        %2528 = vmatprep.mubr.bf16.mxu0 %v1923
        %2529 = vmatmul.mubr.bf16.gmra.mxu0 %v1922
        %v2530 = vpop.f32.mrf.mxu0
        %v2531 = vadd.f32 %v2434, %v2530
        %v2532 = vpop.f32.mrf.mxu0
        %v2533 = vpop.f32.mrf.mxu0
        %v2534 = vadd.f32 %v2437, %v2533
        %v2535 = vpop.f32.mrf.mxu0
        %2536 = vmatprep.mubr.bf16.mxu0 %v1929
        %2537 = vmatmul.mubr.bf16.gmra.mxu0 %v1928
        %v2538 = vpop.f32.mrf.mxu0
        %v2539 = vadd.f32 %v2442, %v2538
        %v2540 = vpop.f32.mrf.mxu0
        %v2541 = vpop.f32.mrf.mxu0
        %v2542 = vadd.f32 %v2445, %v2541
        %v2543 = vpop.f32.mrf.mxu0
        %2544 = vmatprep.mubr.bf16.mxu0 %v1935
        %2545 = vmatmul.mubr.bf16.gmra.mxu0 %v1934
        %v2546 = vpop.f32.mrf.mxu0
        %v2547 = vadd.f32 %v2450, %v2546
        %v2548 = vpop.f32.mrf.mxu0
        %v2549 = vpop.f32.mrf.mxu0
        %v2550 = vadd.f32 %v2453, %v2549
        %v2551 = vpop.f32.mrf.mxu0
        %2552 = vmatprep.mubr.bf16.mxu0 %v1941
        %2553 = vmatmul.mubr.bf16.gmra.mxu0 %v1940
        %v2554 = vpop.f32.mrf.mxu0
        %v2555 = vadd.f32 %v2458, %v2554
        %v2556 = vpop.f32.mrf.mxu0
        %v2557 = vpop.f32.mrf.mxu0
        %v2558 = vadd.f32 %v2461, %v2557
        %v2559 = vpop.f32.mrf.mxu0
        %2560 = vmatprep.mubr.bf16.mxu0 %v1947
        %2561 = vmatmul.mubr.bf16.gmra.mxu0 %v1946
        %v2562 = vpop.f32.mrf.mxu0
        %v2563 = vadd.f32 %v2466, %v2562
        %v2564 = vpop.f32.mrf.mxu0
        %v2565 = vpop.f32.mrf.mxu0
        %v2566 = vadd.f32 %v2469, %v2565
        %v2567 = vpop.f32.mrf.mxu0
        %2568 = vmatprep.mubr.bf16.mxu0 %v1953
        %2569 = vmatmul.mubr.bf16.gmra.mxu0 %v1952
        %v2570 = vpop.f32.mrf.mxu0
        %v2571 = vadd.f32 %v2474, %v2570
        %v2572 = vpop.f32.mrf.mxu0
        %v2573 = vpop.f32.mrf.mxu0
        %v2574 = vadd.f32 %v2477, %v2573
        %v2575 = vpop.f32.mrf.mxu0
        %2576 = vmatprep.mubr.bf16.mxu0 %v1959
        %2577 = vmatmul.mubr.bf16.gmra.mxu0 %v1958
        %v2578 = vpop.f32.mrf.mxu0
        %v2579 = vadd.f32 %v2482, %v2578
        %v2580 = vpop.f32.mrf.mxu0
        %v2581 = vpop.f32.mrf.mxu0
        %v2582 = vadd.f32 %v2485, %v2581
        %v2583 = vpop.f32.mrf.mxu0
        %2584 = vmatprep.mubr.bf16.mxu0 %v1965
        %2585 = vmatmul.mubr.bf16.gmra.mxu0 %v1964
        %v2586 = vpop.f32.mrf.mxu0
        %v2587 = vadd.f32 %v2490, %v2586
        %v2588 = vpop.f32.mrf.mxu0
        %v2589 = vpop.f32.mrf.mxu0
        %v2590 = vadd.f32 %v2493, %v2589
        %v2591 = vpop.f32.mrf.mxu0
        %2592 = vdwg.mxu0
        %v2593 = vadd.f32 %v1568, %v2531
        %v2594 = vadd.f32 %v1571, %v2534
        %v2595 = vadd.f32 %v1576, %v2539
        %v2596 = vadd.f32 %v1579, %v2542
        %v2597 = vadd.f32 %v1584, %v2547
        %v2598 = vadd.f32 %v1587, %v2550
        %v2599 = vadd.f32 %v1592, %v2555
        %v2600 = vadd.f32 %v1595, %v2558
        %v2601 = vadd.f32 %v1600, %v2563
        %v2602 = vadd.f32 %v1603, %v2566
        %v2603 = vadd.f32 %v1608, %v2571
        %v2604 = vadd.f32 %v1611, %v2574
        %v2605 = vadd.f32 %v1616, %v2579
        %v2606 = vadd.f32 %v1619, %v2582
        %v2607 = vadd.f32 %v1624, %v2587
        %v2608 = vadd.f32 %v1627, %v2590
        %v2609 = vld [vmem:[%s6] sm:$0x1]
        %v2611 = vlaneseq
        %v2612 = vshrl.u32 %v2611, 7
        %v2613 = vsub.s32 0, %v2612
        %v2614 = vrot.slane %v2609, %v2613
        %v2616 = vadd.f32 %v2593, %v2614
        %v2617 = vadd.f32 %v2594, %v2614
        %v2618 = vadd.f32 %v2595, %v2614
        %v2619 = vadd.f32 %v2596, %v2614
        %v2620 = vadd.f32 %v2597, %v2614
        %v2621 = vadd.f32 %v2598, %v2614
        %v2622 = vadd.f32 %v2599, %v2614
        %v2623 = vadd.f32 %v2600, %v2614
        %v2624 = vadd.f32 %v2601, %v2614
        %v2625 = vadd.f32 %v2602, %v2614
        %v2626 = vadd.f32 %v2603, %v2614
        %v2627 = vadd.f32 %v2604, %v2614
        %v2628 = vadd.f32 %v2605, %v2614
        %v2629 = vadd.f32 %v2606, %v2614
        %v2630 = vadd.f32 %v2607, %v2614
        %v2631 = vadd.f32 %v2608, %v2614
        %vm2632 = vcmp.ge.f32.partialorder %v2616, 0.0
        %vm2633 = vcmp.ge.f32.partialorder %v2617, 0.0
        %vm2634 = vcmp.ge.f32.partialorder %v2618, 0.0
        %vm2635 = vcmp.ge.f32.partialorder %v2619, 0.0
        %vm2636 = vcmp.ge.f32.partialorder %v2620, 0.0
        %vm2637 = vcmp.ge.f32.partialorder %v2621, 0.0
        %vm2638 = vcmp.ge.f32.partialorder %v2622, 0.0
        %vm2639 = vcmp.ge.f32.partialorder %v2623, 0.0
        %vm2640 = vcmp.ge.f32.partialorder %v2624, 0.0
        %vm2641 = vcmp.ge.f32.partialorder %v2625, 0.0
        %vm2642 = vcmp.ge.f32.partialorder %v2626, 0.0
        %vm2643 = vcmp.ge.f32.partialorder %v2627, 0.0
        %vm2644 = vcmp.ge.f32.partialorder %v2628, 0.0
        %vm2645 = vcmp.ge.f32.partialorder %v2629, 0.0
        %vm2646 = vcmp.ge.f32.partialorder %v2630, 0.0
        %vm2647 = vcmp.ge.f32.partialorder %v2631, 0.0
        %v2648 = vstv %s483
        %v2649 = vmul.f32 %v2648, %v2616
        %v2650 = vmul.f32 %v2648, %v2617
        %v2651 = vmul.f32 %v2648, %v2618
        %v2652 = vmul.f32 %v2648, %v2619
        %v2653 = vmul.f32 %v2648, %v2620
        %v2654 = vmul.f32 %v2648, %v2621
        %v2655 = vmul.f32 %v2648, %v2622
        %v2656 = vmul.f32 %v2648, %v2623
        %v2657 = vmul.f32 %v2648, %v2624
        %v2658 = vmul.f32 %v2648, %v2625
        %v2659 = vmul.f32 %v2648, %v2626
        %v2660 = vmul.f32 %v2648, %v2627
        %v2661 = vmul.f32 %v2648, %v2628
        %v2662 = vmul.f32 %v2648, %v2629
        %v2663 = vmul.f32 %v2648, %v2630
        %v2664 = vmul.f32 %v2648, %v2631
        %v2665 = vsel %vm2632, %v2616, %v2649
        %v2666 = vsel %vm2633, %v2617, %v2650
        %v2667 = vsel %vm2634, %v2618, %v2651
        %v2668 = vsel %vm2635, %v2619, %v2652
        %v2669 = vsel %vm2636, %v2620, %v2653
        %v2670 = vsel %vm2637, %v2621, %v2654
        %v2671 = vsel %vm2638, %v2622, %v2655
        %v2672 = vsel %vm2639, %v2623, %v2656
        %v2673 = vsel %vm2640, %v2624, %v2657
        %v2674 = vsel %vm2641, %v2625, %v2658
        %v2675 = vsel %vm2642, %v2626, %v2659
        %v2676 = vsel %vm2643, %v2627, %v2660
        %v2677 = vsel %vm2644, %v2628, %v2661
        %v2678 = vsel %vm2645, %v2629, %v2662
        %v2679 = vsel %vm2646, %v2630, %v2663
        %v2680 = vsel %vm2647, %v2631, %v2664
        %v2681 = vld [vmem:[%s7] sm:$0xff]
        %v2682 = vld [vmem:[%s7 + $0x8] sm:$0xff]
        %v2683 = vld [vmem:[%s7 + $0x10] sm:$0xff]
        %v2684 = vld [vmem:[%s7 + $0x18] sm:$0xff]
        %v2685 = vld [vmem:[%s8] sm:$0x1]
        %v2687 = vlaneseq
        %v2688 = vshrl.u32 %v2687, 7
        %v2689 = vsub.s32 0, %v2688
        %v2690 = vrot.slane %v2685, %v2689
        %vm2692 = vcmask 261120
        %v2694 = vsel %vm2692, %v2665, 0
        %v2697 = vsel %vm2692, %v2666, 0
        %v2700 = vsel %vm2692, %v2667, 0
        %v2703 = vsel %vm2692, %v2668, 0
        %v2706 = vsel %vm2692, %v2669, 0
        %v2709 = vsel %vm2692, %v2670, 0
        %v2712 = vsel %vm2692, %v2671, 0
        %v2715 = vsel %vm2692, %v2672, 0
        %v2718 = vsel %vm2692, %v2673, 0
        %v2721 = vsel %vm2692, %v2674, 0
        %v2724 = vsel %vm2692, %v2675, 0
        %v2727 = vsel %vm2692, %v2676, 0
        %v2730 = vsel %vm2692, %v2677, 0
        %v2733 = vsel %vm2692, %v2678, 0
        %v2736 = vsel %vm2692, %v2679, 0
        %v2739 = vsel %vm2692, %v2680, 0
        %2741 = vmatprep.subr.mxu0 0.0
        %2742 = vmatpush1.msra.mxu0 0.0
        %2743 = vmatprep.subr.mxu0 0.0
        %2744 = vmatpush1.msra.mxu0 0.0
        %2745 = vmatprep.subr.mxu0 0.0
        %2746 = vmatpush1.msra.mxu0 0.0
        %2747 = vmatprep.subr.mxu0 0.0
        %2748 = vmatpush1.msra.mxu0 0.0
        %2749 = vmatprep.subr.mxu0 0.0
        %2750 = vmatpush1.msra.mxu0 0.0
        %2751 = vmatprep.subr.mxu0 0.0
        %2752 = vmatpush1.msra.mxu0 0.0
        %2753 = vmatprep.subr.mxu0 0.0
        %2754 = vmatpush1.msra.mxu0 0.0
        %2755 = vmatprep.subr.mxu0 0.0
        %2756 = vmatpush1.msra.mxu0 0.0
        %2757 = vmatprep.subr.mxu0 0.0
        %2758 = vmatpush1.msra.mxu0 0.0
        %2759 = vmatprep.subr.mxu0 0.0
        %2760 = vmatpush1.msra.mxu0 0.0
        %2761 = vmatprep.subr.mxu0 0.0
        %2762 = vmatpush1.msra.mxu0 0.0
        %2763 = vmatprep.subr.mxu0 0.0
        %2764 = vmatpush1.msra.mxu0 0.0
        %2765 = vmatprep.subr.mxu0 0.0
        %2766 = vmatpush1.msra.mxu0 %v2684
        %2767 = vmatprep.subr.mxu0 0.0
        %2768 = vmatpush1.msra.mxu0 %v2683
        %2769 = vmatprep.subr.mxu0 0.0
        %2770 = vmatpush1.msra.mxu0 %v2682
        %2771 = vmatprep.subr.mxu0 0.0
        %2772 = vmatpush1.msra.mxu0 %v2681
        %2773 = vmatprep.subr.mxu0 0.0
        %2774 = vmatpush2.msra.mxu0 0.0
        %2775 = vmatprep.subr.mxu0 0.0
        %2776 = vmatpush2.msra.mxu0 0.0
        %2777 = vmatprep.subr.mxu0 0.0
        %2778 = vmatpush2.msra.mxu0 0.0
        %2779 = vmatprep.subr.mxu0 0.0
        %2780 = vmatpush2.msra.mxu0 0.0
        %2781 = vmatprep.subr.mxu0 0.0
        %2782 = vmatpush2.msra.mxu0 0.0
        %2783 = vmatprep.subr.mxu0 0.0
        %2784 = vmatpush2.msra.mxu0 0.0
        %2785 = vmatprep.subr.mxu0 0.0
        %2786 = vmatpush2.msra.mxu0 0.0
        %2787 = vmatprep.subr.mxu0 0.0
        %2788 = vmatpush2.msra.mxu0 0.0
        %2789 = vmatprep.subr.mxu0 0.0
        %2790 = vmatpush2.msra.mxu0 0.0
        %2791 = vmatprep.subr.mxu0 0.0
        %2792 = vmatpush2.msra.mxu0 0.0
        %2793 = vmatprep.subr.mxu0 0.0
        %2794 = vmatpush2.msra.mxu0 0.0
        %2795 = vmatprep.subr.mxu0 0.0
        %2796 = vmatpush2.msra.mxu0 0.0
        %2797 = vmatprep.subr.mxu0 0.0
        %2798 = vmatpush2.msra.mxu0 0.0
        %2799 = vmatprep.subr.mxu0 0.0
        %2800 = vmatpush2.msra.mxu0 0.0
        %2801 = vmatprep.subr.mxu0 0.0
        %2802 = vmatpush2.msra.mxu0 0.0
        %2803 = vmatprep.subr.mxu0 0.0
        %2804 = vmatpush2.msra.mxu0 0.0
        %2805 = vmatprep.mubr.f32.mxu0 0.0
        %2806 = vmatmul.mubr.f32.gmra.mxu0 %v2694
        %v2807 = vpop.f32.mrf.mxu0
        %v2808 = vadd.f32 %v2690, %v2807
        %v2809 = vpop.f32.mrf.mxu0
        %2810 = vmatprep.mubr.f32.mxu0 0.0
        %2811 = vmatmul.mubr.f32.gmra.mxu0 %v2697
        %v2812 = vpop.f32.mrf.mxu0
        %v2813 = vadd.f32 %v2690, %v2812
        %v2814 = vpop.f32.mrf.mxu0
        %2815 = vmatprep.mubr.f32.mxu0 0.0
        %2816 = vmatmul.mubr.f32.gmra.mxu0 %v2700
        %v2817 = vpop.f32.mrf.mxu0
        %v2818 = vadd.f32 %v2690, %v2817
        %v2819 = vpop.f32.mrf.mxu0
        %2820 = vmatprep.mubr.f32.mxu0 0.0
        %2821 = vmatmul.mubr.f32.gmra.mxu0 %v2703
        %v2822 = vpop.f32.mrf.mxu0
        %v2823 = vadd.f32 %v2690, %v2822
        %v2824 = vpop.f32.mrf.mxu0
        %2825 = vmatprep.mubr.f32.mxu0 0.0
        %2826 = vmatmul.mubr.f32.gmra.mxu0 %v2706
        %v2827 = vpop.f32.mrf.mxu0
        %v2828 = vadd.f32 %v2690, %v2827
        %v2829 = vpop.f32.mrf.mxu0
        %2830 = vmatprep.mubr.f32.mxu0 0.0
        %2831 = vmatmul.mubr.f32.gmra.mxu0 %v2709
        %v2832 = vpop.f32.mrf.mxu0
        %v2833 = vadd.f32 %v2690, %v2832
        %v2834 = vpop.f32.mrf.mxu0
        %2835 = vmatprep.mubr.f32.mxu0 0.0
        %2836 = vmatmul.mubr.f32.gmra.mxu0 %v2712
        %v2837 = vpop.f32.mrf.mxu0
        %v2838 = vadd.f32 %v2690, %v2837
        %v2839 = vpop.f32.mrf.mxu0
        %2840 = vmatprep.mubr.f32.mxu0 0.0
        %2841 = vmatmul.mubr.f32.gmra.mxu0 %v2715
        %v2842 = vpop.f32.mrf.mxu0
        %v2843 = vadd.f32 %v2690, %v2842
        %v2844 = vpop.f32.mrf.mxu0
        %2845 = vmatprep.mubr.f32.mxu0 0.0
        %2846 = vmatmul.mubr.f32.gmra.mxu0 %v2718
        %v2847 = vpop.f32.mrf.mxu0
        %v2848 = vadd.f32 %v2690, %v2847
        %v2849 = vpop.f32.mrf.mxu0
        %2850 = vmatprep.mubr.f32.mxu0 0.0
        %2851 = vmatmul.mubr.f32.gmra.mxu0 %v2721
        %v2852 = vpop.f32.mrf.mxu0
        %v2853 = vadd.f32 %v2690, %v2852
        %v2854 = vpop.f32.mrf.mxu0
        %2855 = vmatprep.mubr.f32.mxu0 0.0
        %2856 = vmatmul.mubr.f32.gmra.mxu0 %v2724
        %v2857 = vpop.f32.mrf.mxu0
        %v2858 = vadd.f32 %v2690, %v2857
        %v2859 = vpop.f32.mrf.mxu0
        %2860 = vmatprep.mubr.f32.mxu0 0.0
        %2861 = vmatmul.mubr.f32.gmra.mxu0 %v2727
        %v2862 = vpop.f32.mrf.mxu0
        %v2863 = vadd.f32 %v2690, %v2862
        %v2864 = vpop.f32.mrf.mxu0
        %2865 = vmatprep.mubr.f32.mxu0 0.0
        %2866 = vmatmul.mubr.f32.gmra.mxu0 %v2730
        %v2867 = vpop.f32.mrf.mxu0
        %v2868 = vadd.f32 %v2690, %v2867
        %v2869 = vpop.f32.mrf.mxu0
        %2870 = vmatprep.mubr.f32.mxu0 0.0
        %2871 = vmatmul.mubr.f32.gmra.mxu0 %v2733
        %v2872 = vpop.f32.mrf.mxu0
        %v2873 = vadd.f32 %v2690, %v2872
        %v2874 = vpop.f32.mrf.mxu0
        %2875 = vmatprep.mubr.f32.mxu0 0.0
        %2876 = vmatmul.mubr.f32.gmra.mxu0 %v2736
        %v2877 = vpop.f32.mrf.mxu0
        %v2878 = vadd.f32 %v2690, %v2877
        %v2879 = vpop.f32.mrf.mxu0
        %2880 = vmatprep.mubr.f32.mxu0 0.0
        %2881 = vmatmul.mubr.f32.gmra.mxu0 %v2739
        %v2882 = vpop.f32.mrf.mxu0
        %v2883 = vadd.f32 %v2690, %v2882
        %v2884 = vpop.f32.mrf.mxu0
        %2885 = vdwg.mxu0
        %vm2886 = vcmp.ge.f32.partialorder %v2808, 0.0
        %vm2887 = vcmp.ge.f32.partialorder %v2813, 0.0
        %vm2888 = vcmp.ge.f32.partialorder %v2818, 0.0
        %vm2889 = vcmp.ge.f32.partialorder %v2823, 0.0
        %vm2890 = vcmp.ge.f32.partialorder %v2828, 0.0
        %vm2891 = vcmp.ge.f32.partialorder %v2833, 0.0
        %vm2892 = vcmp.ge.f32.partialorder %v2838, 0.0
        %vm2893 = vcmp.ge.f32.partialorder %v2843, 0.0
        %vm2894 = vcmp.ge.f32.partialorder %v2848, 0.0
        %vm2895 = vcmp.ge.f32.partialorder %v2853, 0.0
        %vm2896 = vcmp.ge.f32.partialorder %v2858, 0.0
        %vm2897 = vcmp.ge.f32.partialorder %v2863, 0.0
        %vm2898 = vcmp.ge.f32.partialorder %v2868, 0.0
        %vm2899 = vcmp.ge.f32.partialorder %v2873, 0.0
        %vm2900 = vcmp.ge.f32.partialorder %v2878, 0.0
        %vm2901 = vcmp.ge.f32.partialorder %v2883, 0.0
        %v2902 = vmul.f32 %v2648, %v2808
        %v2903 = vmul.f32 %v2648, %v2813
        %v2904 = vmul.f32 %v2648, %v2818
        %v2905 = vmul.f32 %v2648, %v2823
        %v2906 = vmul.f32 %v2648, %v2828
        %v2907 = vmul.f32 %v2648, %v2833
        %v2908 = vmul.f32 %v2648, %v2838
        %v2909 = vmul.f32 %v2648, %v2843
        %v2910 = vmul.f32 %v2648, %v2848
        %v2911 = vmul.f32 %v2648, %v2853
        %v2912 = vmul.f32 %v2648, %v2858
        %v2913 = vmul.f32 %v2648, %v2863
        %v2914 = vmul.f32 %v2648, %v2868
        %v2915 = vmul.f32 %v2648, %v2873
        %v2916 = vmul.f32 %v2648, %v2878
        %v2917 = vmul.f32 %v2648, %v2883
        %v2918 = vsel %vm2886, %v2808, %v2902
        %v2919 = vsel %vm2887, %v2813, %v2903
        %v2920 = vsel %vm2888, %v2818, %v2904
        %v2921 = vsel %vm2889, %v2823, %v2905
        %v2922 = vsel %vm2890, %v2828, %v2906
        %v2923 = vsel %vm2891, %v2833, %v2907
        %v2924 = vsel %vm2892, %v2838, %v2908
        %v2925 = vsel %vm2893, %v2843, %v2909
        %v2926 = vsel %vm2894, %v2848, %v2910
        %v2927 = vsel %vm2895, %v2853, %v2911
        %v2928 = vsel %vm2896, %v2858, %v2912
        %v2929 = vsel %vm2897, %v2863, %v2913
        %v2930 = vsel %vm2898, %v2868, %v2914
        %v2931 = vsel %vm2899, %v2873, %v2915
        %v2932 = vsel %vm2900, %v2878, %v2916
        %v2933 = vsel %vm2901, %v2883, %v2917
        %2934 = vst.msk [vmem:[%s428] sm:$0xff] %vm2692, %v2918
        %2935 = vst.msk [vmem:[%s428 + $0x8] sm:$0xff] %vm2692, %v2919
        %2936 = vst.msk [vmem:[%s428 + $0x10] sm:$0xff] %vm2692, %v2920
        %2937 = vst.msk [vmem:[%s428 + $0x18] sm:$0xff] %vm2692, %v2921
        %2938 = vst.msk [vmem:[%s428 + $0x20] sm:$0xff] %vm2692, %v2922
        %2939 = vst.msk [vmem:[%s428 + $0x28] sm:$0xff] %vm2692, %v2923
        %2940 = vst.msk [vmem:[%s428 + $0x30] sm:$0xff] %vm2692, %v2924
        %2941 = vst.msk [vmem:[%s428 + $0x38] sm:$0xff] %vm2692, %v2925
        %2942 = vst.msk [vmem:[%s428 + $0x40] sm:$0xff] %vm2692, %v2926
        %2943 = vst.msk [vmem:[%s428 + $0x48] sm:$0xff] %vm2692, %v2927
        %2944 = vst.msk [vmem:[%s428 + $0x50] sm:$0xff] %vm2692, %v2928
        %2945 = vst.msk [vmem:[%s428 + $0x58] sm:$0xff] %vm2692, %v2929
        %2946 = vst.msk [vmem:[%s428 + $0x60] sm:$0xff] %vm2692, %v2930
        %2947 = vst.msk [vmem:[%s428 + $0x68] sm:$0xff] %vm2692, %v2931
        %2948 = vst.msk [vmem:[%s428 + $0x70] sm:$0xff] %vm2692, %v2932
        %2949 = vst.msk [vmem:[%s428 + $0x78] sm:$0xff] %vm2692, %v2933
        %s2950 = sand.u32 %s255, 1
        %s2951 = sand.u32 %s255, 1
        %s2952 = smul.addr %s2951, 128
        %s2953 = scalar_lea.vmem [#allocation3], %s2952
        // Predicated region
        $region61: #{node_feature_embedding.1} parent=59 // pred_check
          %p2954 = pneg %p265
        $region62: #{node_feature_embedding.1} parent=59 // pred_check_branch
          %2956 = sbr.rel (%p2954) target = $region64
        $region63: #{node_feature_embedding.1} parent=59 // pred_region
          %s2957 = smul.u32 16, %s22
          %s2958 = ssub.s32 25, %s2957
          %p2959 = scmp.lt.s32.totalorder %s2958, 16
          %s2960 = scalar_select %p2959, %s2958, 16
          %s2961 = smul.u32 128, %s2960
          %p2962 = scmp.ne.s32.totalorder 0, %s2961
          %s2963 = smul.addr %s2957, 8
          %s2964 = scalar_lea.vmem %s10, %s2963
          // Predicated region
          $region65: #{node_feature_embedding.1} parent=63 // pred_check
            %p2965 = pneg %p2962
          $region66: #{node_feature_embedding.1} parent=63 // pred_check_branch
            %2967 = sbr.rel (%p2965) target = $region68
          $region67: #{node_feature_embedding.1} parent=63 // pred_region
            // Predicated region
            $region69: #{node_feature_embedding.1} parent=67 // pred_check
              _
            $region70: #{node_feature_embedding.1} parent=67 // pred_check_branch
              %2969 = sbr.rel (0) target = $region72
            $region71: #{node_feature_embedding.1} parent=67 // pred_region
              // Predicated region
              $region91: #{node_feature_embedding.1} parent=71 // pred_check
                _
              $region92: #{node_feature_embedding.1} parent=71 // pred_check_branch
                %3049 = sbr.rel (0) target = $region94
              $region93: #{node_feature_embedding.1} parent=71 // pred_region
                %s3050 = sshrl.u32 %s2960, 4
                // While loop
                $region95: #{node_feature_embedding.1} parent=93 // loop_pre_header
                  _
                $region96: #{node_feature_embedding.1} parent=93 // loop_header
                  %s3052 = sphi 0, %s3054
                  %p3053 = scmp.ge.s32.totalorder %s3052, %s3050
                  %s3057 = sphi 0, %s3094
                  %s3058 = sphi %s2953, %s3097
                  %s3059 = sphi %s2964, %s3098
                $region97: #{node_feature_embedding.1} parent=93 // loop_header_branch
                  %3056 = sbr.rel (%p3053) target = $region101
                $region98: #{node_feature_embedding.1} parent=93 // loop_body
                  %v3060 = vld [vmem:[%s3058] sm:$0xff]
                  %3061 = vst [vmem:[%s3059] sm:$0xff] %v3060
                  %v3062 = vld [vmem:[%s3058 + $0x8] sm:$0xff]
                  %3063 = vst [vmem:[%s3059 + $0x8] sm:$0xff] %v3062
                  %v3064 = vld [vmem:[%s3058 + $0x10] sm:$0xff]
                  %3065 = vst [vmem:[%s3059 + $0x10] sm:$0xff] %v3064
                  %v3066 = vld [vmem:[%s3058 + $0x18] sm:$0xff]
                  %3067 = vst [vmem:[%s3059 + $0x18] sm:$0xff] %v3066
                  %v3068 = vld [vmem:[%s3058 + $0x20] sm:$0xff]
                  %3069 = vst [vmem:[%s3059 + $0x20] sm:$0xff] %v3068
                  %v3070 = vld [vmem:[%s3058 + $0x28] sm:$0xff]
                  %3071 = vst [vmem:[%s3059 + $0x28] sm:$0xff] %v3070
                  %v3072 = vld [vmem:[%s3058 + $0x30] sm:$0xff]
                  %3073 = vst [vmem:[%s3059 + $0x30] sm:$0xff] %v3072
                  %v3074 = vld [vmem:[%s3058 + $0x38] sm:$0xff]
                  %3075 = vst [vmem:[%s3059 + $0x38] sm:$0xff] %v3074
                  %v3076 = vld [vmem:[%s3058 + $0x40] sm:$0xff]
                  %3077 = vst [vmem:[%s3059 + $0x40] sm:$0xff] %v3076
                  %v3078 = vld [vmem:[%s3058 + $0x48] sm:$0xff]
                  %3079 = vst [vmem:[%s3059 + $0x48] sm:$0xff] %v3078
                  %v3080 = vld [vmem:[%s3058 + $0x50] sm:$0xff]
                  %3081 = vst [vmem:[%s3059 + $0x50] sm:$0xff] %v3080
                  %v3082 = vld [vmem:[%s3058 + $0x58] sm:$0xff]
                  %3083 = vst [vmem:[%s3059 + $0x58] sm:$0xff] %v3082
                  %v3084 = vld [vmem:[%s3058 + $0x60] sm:$0xff]
                  %3085 = vst [vmem:[%s3059 + $0x60] sm:$0xff] %v3084
                  %v3086 = vld [vmem:[%s3058 + $0x68] sm:$0xff]
                  %3087 = vst [vmem:[%s3059 + $0x68] sm:$0xff] %v3086
                  %v3088 = vld [vmem:[%s3058 + $0x70] sm:$0xff]
                  %3089 = vst [vmem:[%s3059 + $0x70] sm:$0xff] %v3088
                  %v3090 = vld [vmem:[%s3058 + $0x78] sm:$0xff]
                  %3091 = vst [vmem:[%s3059 + $0x78] sm:$0xff] %v3090
                  %s3092 = sadd.s32 1, %s3057
                  %p3093 = scmp.ge.s32.totalorder %s3092, %s3050
                  %s3094 = scalar_select %p3093, 0, %s3092
                  %s3095 = smul.u32 %s3094, 128
                  %s3096 = smul.u32 %s3094, 128
                  %s3097 = scalar_lea.vmem %s2953, %s3095 [#allocation3]
                  %s3098 = scalar_lea.vmem %s2964, %s3096
                $region99: #{node_feature_embedding.1} parent=93 // loop_footer
                  %s3054 = sadd.s32 %s3052, 1
                $region100: #{node_feature_embedding.1} parent=93 // loop_footer_branch
                  %3051 = sbr.rel target = $region96
                $region101: #{node_feature_embedding.1} parent=93 // loop_exit
                  _
                %s3099 = sshrl.u32 %s2960, 4
                %s3100 = sand.u32 %s2960, 15
                %s3101 = smul.u32 %s3099, 16
                %s3102 = smul.u32 8, %s3101
                %s3103 = scalar_lea.vmem %s2953, %s3102 [#allocation3]
                %s3104 = smul.u32 8, %s3101
                %s3105 = scalar_lea.vmem %s2964, %s3104
                // While loop
                $region102: #{node_feature_embedding.1} parent=93 // loop_pre_header
                  _
                $region103: #{node_feature_embedding.1} parent=93 // loop_header
                  %s3107 = sphi 0, %s3109
                  %p3108 = scmp.ge.s32.totalorder %s3107, %s3100
                  %s3112 = sphi 0, %s3119
                  %s3113 = sphi %s3103, %s3122
                  %s3114 = sphi %s3105, %s3123
                $region104: #{node_feature_embedding.1} parent=93 // loop_header_branch
                  %3111 = sbr.rel (%p3108) target = $region108
                $region105: #{node_feature_embedding.1} parent=93 // loop_body
                  %v3115 = vld [vmem:[%s3113] sm:$0xff]
                  %3116 = vst [vmem:[%s3114] sm:$0xff] %v3115
                  %s3117 = sadd.s32 1, %s3112
                  %p3118 = scmp.ge.s32.totalorder %s3117, %s3100
                  %s3119 = scalar_select %p3118, 0, %s3117
                  %s3120 = smul.u32 %s3119, 8
                  %s3121 = smul.u32 %s3119, 8
                  %s3122 = scalar_lea.vmem %s3103, %s3120 [#allocation3]
                  %s3123 = scalar_lea.vmem %s3105, %s3121
                $region106: #{node_feature_embedding.1} parent=93 // loop_footer
                  %s3109 = sadd.s32 %s3107, 1
                $region107: #{node_feature_embedding.1} parent=93 // loop_footer_branch
                  %3106 = sbr.rel target = $region103
                $region108: #{node_feature_embedding.1} parent=93 // loop_exit
                  _
              $region94: #{node_feature_embedding.1} parent=71 // pred_fallthru
                _
              // Predicated region
              $region109: #{node_feature_embedding.1} parent=71 // pred_check
                _
              $region110: #{node_feature_embedding.1} parent=71 // pred_check_branch
                %3125 = sbr.rel target = $region112
              $region111: #{node_feature_embedding.1} parent=71 // pred_region
                _
              $region112: #{node_feature_embedding.1} parent=71 // pred_fallthru
                _
            $region72: #{node_feature_embedding.1} parent=67 // pred_fallthru
              _
            // Predicated region
            $region73: #{node_feature_embedding.1} parent=67 // pred_check
              _
            $region74: #{node_feature_embedding.1} parent=67 // pred_check_branch
              %2971 = sbr.rel target = $region76
            $region75: #{node_feature_embedding.1} parent=67 // pred_region
              %s2973 = ssub.s32 256, 1
              %s2974 = sshrl.u32 %s2960, 4
              // While loop
              $region77: #{node_feature_embedding.1} parent=75 // loop_pre_header
                _
              $region78: #{node_feature_embedding.1} parent=75 // loop_header
                %s2976 = sphi 0, %s2978
                %p2977 = scmp.ge.s32.totalorder %s2976, %s2974
                %s2981 = sphi 0, %s3018
                %s2982 = sphi %s2953, %s3021
                %s2983 = sphi %s2964, %s3022
              $region79: #{node_feature_embedding.1} parent=75 // loop_header_branch
                %2980 = sbr.rel (%p2977) target = $region83
              $region80: #{node_feature_embedding.1} parent=75 // loop_body
                %v2984 = vld [vmem:[%s2982] sm:%s2973]
                %2985 = vst [vmem:[%s2983] sm:%s2973] %v2984
                %v2986 = vld [vmem:[%s2982 + $0x8] sm:%s2973]
                %2987 = vst [vmem:[%s2983 + $0x8] sm:%s2973] %v2986
                %v2988 = vld [vmem:[%s2982 + $0x10] sm:%s2973]
                %2989 = vst [vmem:[%s2983 + $0x10] sm:%s2973] %v2988
                %v2990 = vld [vmem:[%s2982 + $0x18] sm:%s2973]
                %2991 = vst [vmem:[%s2983 + $0x18] sm:%s2973] %v2990
                %v2992 = vld [vmem:[%s2982 + $0x20] sm:%s2973]
                %2993 = vst [vmem:[%s2983 + $0x20] sm:%s2973] %v2992
                %v2994 = vld [vmem:[%s2982 + $0x28] sm:%s2973]
                %2995 = vst [vmem:[%s2983 + $0x28] sm:%s2973] %v2994
                %v2996 = vld [vmem:[%s2982 + $0x30] sm:%s2973]
                %2997 = vst [vmem:[%s2983 + $0x30] sm:%s2973] %v2996
                %v2998 = vld [vmem:[%s2982 + $0x38] sm:%s2973]
                %2999 = vst [vmem:[%s2983 + $0x38] sm:%s2973] %v2998
                %v3000 = vld [vmem:[%s2982 + $0x40] sm:%s2973]
                %3001 = vst [vmem:[%s2983 + $0x40] sm:%s2973] %v3000
                %v3002 = vld [vmem:[%s2982 + $0x48] sm:%s2973]
                %3003 = vst [vmem:[%s2983 + $0x48] sm:%s2973] %v3002
                %v3004 = vld [vmem:[%s2982 + $0x50] sm:%s2973]
                %3005 = vst [vmem:[%s2983 + $0x50] sm:%s2973] %v3004
                %v3006 = vld [vmem:[%s2982 + $0x58] sm:%s2973]
                %3007 = vst [vmem:[%s2983 + $0x58] sm:%s2973] %v3006
                %v3008 = vld [vmem:[%s2982 + $0x60] sm:%s2973]
                %3009 = vst [vmem:[%s2983 + $0x60] sm:%s2973] %v3008
                %v3010 = vld [vmem:[%s2982 + $0x68] sm:%s2973]
                %3011 = vst [vmem:[%s2983 + $0x68] sm:%s2973] %v3010
                %v3012 = vld [vmem:[%s2982 + $0x70] sm:%s2973]
                %3013 = vst [vmem:[%s2983 + $0x70] sm:%s2973] %v3012
                %v3014 = vld [vmem:[%s2982 + $0x78] sm:%s2973]
                %3015 = vst [vmem:[%s2983 + $0x78] sm:%s2973] %v3014
                %s3016 = sadd.s32 1, %s2981
                %p3017 = scmp.ge.s32.totalorder %s3016, %s2974
                %s3018 = scalar_select %p3017, 0, %s3016
                %s3019 = smul.u32 %s3018, 128
                %s3020 = smul.u32 %s3018, 128
                %s3021 = scalar_lea.vmem %s2953, %s3019 [#allocation3]
                %s3022 = scalar_lea.vmem %s2964, %s3020
              $region81: #{node_feature_embedding.1} parent=75 // loop_footer
                %s2978 = sadd.s32 %s2976, 1
              $region82: #{node_feature_embedding.1} parent=75 // loop_footer_branch
                %2975 = sbr.rel target = $region78
              $region83: #{node_feature_embedding.1} parent=75 // loop_exit
                _
              %s3023 = sshrl.u32 %s2960, 4
              %s3024 = sand.u32 %s2960, 15
              %s3025 = smul.u32 %s3023, 16
              %s3026 = smul.u32 8, %s3025
              %s3027 = scalar_lea.vmem %s2953, %s3026 [#allocation3]
              %s3028 = smul.u32 8, %s3025
              %s3029 = scalar_lea.vmem %s2964, %s3028
              // While loop
              $region84: #{node_feature_embedding.1} parent=75 // loop_pre_header
                _
              $region85: #{node_feature_embedding.1} parent=75 // loop_header
                %s3031 = sphi 0, %s3033
                %p3032 = scmp.ge.s32.totalorder %s3031, %s3024
                %s3036 = sphi 0, %s3043
                %s3037 = sphi %s3027, %s3046
                %s3038 = sphi %s3029, %s3047
              $region86: #{node_feature_embedding.1} parent=75 // loop_header_branch
                %3035 = sbr.rel (%p3032) target = $region90
              $region87: #{node_feature_embedding.1} parent=75 // loop_body
                %v3039 = vld [vmem:[%s3037] sm:%s2973]
                %3040 = vst [vmem:[%s3038] sm:%s2973] %v3039
                %s3041 = sadd.s32 1, %s3036
                %p3042 = scmp.ge.s32.totalorder %s3041, %s3024
                %s3043 = scalar_select %p3042, 0, %s3041
                %s3044 = smul.u32 %s3043, 8
                %s3045 = smul.u32 %s3043, 8
                %s3046 = scalar_lea.vmem %s3027, %s3044 [#allocation3]
                %s3047 = scalar_lea.vmem %s3029, %s3045
              $region88: #{node_feature_embedding.1} parent=75 // loop_footer
                %s3033 = sadd.s32 %s3031, 1
              $region89: #{node_feature_embedding.1} parent=75 // loop_footer_branch
                %3030 = sbr.rel target = $region85
              $region90: #{node_feature_embedding.1} parent=75 // loop_exit
                _
            $region76: #{node_feature_embedding.1} parent=67 // pred_fallthru
              _
          $region68: #{node_feature_embedding.1} parent=63 // pred_fallthru
            _
          %3126 = vnop
        $region64: #{node_feature_embedding.1} parent=59 // pred_fallthru
          _
      $region60: #{node_feature_embedding.1} parent=5 // pred_fallthru
        _
      %p3127 = scmp.le.s32.totalorder 2, %s17
      // Predicated region
      $region113: #{node_feature_embedding.1} parent=5 // pred_check
        %p3128 = pneg %p3127
      $region114: #{node_feature_embedding.1} parent=5 // pred_check_branch
        %3130 = sbr.rel (%p3128) target = $region116
      $region115: #{node_feature_embedding.1} parent=5 // pred_region
        %s3131 = ssub.s32 %s17, 2
        // Predicated region
        $region117: #{node_feature_embedding.1} parent=115 // pred_check
          %p3132 = pneg %p271
        $region118: #{node_feature_embedding.1} parent=115 // pred_check_branch
          %3134 = sbr.rel (%p3132) target = $region120
        $region119: #{node_feature_embedding.1} parent=115 // pred_region
          %s3135 = sand.u32 %s256, 1
          %s3136 = sand.u32 %s256, 1
          %s3137 = smul.addr %s3136, 128
          %s3138 = scalar_lea.vmem [#allocation3], %s3137
        $region120: #{node_feature_embedding.1} parent=115 // pred_fallthru
          _
      $region116: #{node_feature_embedding.1} parent=5 // pred_fallthru
        _
    $region6: #{node_feature_embedding.1} parent=1 // loop_footer
      %s21 = sadd.s32 1, %s17
    $region7: #{node_feature_embedding.1} parent=1 // loop_footer_branch
      %16 = sbr.rel target = $region3
    $region8: #{node_feature_embedding.1} parent=1 // loop_exit
      _

</llo_original>
